<compile_context>
chip_gen: v5e
topology: v5e:2x2
jax: 0.10.0
libtpu: 0.0.40
codegen_flags: <defaults>
</compile_context>

<pallas_src>
import functools
import math

import jax
import jax.numpy as jnp
import numpy as np
from jax.experimental import pallas as pl
from jax.experimental.pallas import tpu as pltpu


# -----------------------------------------------------------------------------
# Small helpers
# -----------------------------------------------------------------------------
def _round_up(v, m):
    return ((v + m - 1) // m) * m


def _pool_out_size(sz, kernel=3, stride=2):
    """PyTorch MaxPool2d(kernel, stride, padding=0, ceil_mode=True) output size."""
    o = math.ceil((sz - kernel) / stride) + 1
    if (o - 1) * stride >= sz:          # last window must start inside the input
        o -= 1
    return o


def _im2col_nhwk(x_nchw, k, stride, pad):
    """(N, Ho, Wo, k*k*C) patches, column order (kh, kw, ci).  Runs in XLA."""
    n, c, h, w = x_nchw.shape
    xp = jnp.pad(x_nchw, ((0, 0), (0, 0), (pad, pad), (pad, pad)))
    ho = (h + 2 * pad - k) // stride + 1
    wo = (w + 2 * pad - k) // stride + 1
    cols = []
    for kh in range(k):
        for kw in range(k):
            cols.append(xp[:, :, kh:kh + stride * (ho - 1) + 1:stride,
                               kw:kw + stride * (wo - 1) + 1:stride])
    p = jnp.stack(cols, axis=-1)                 # (N, C, Ho, Wo, k*k)
    p = p.transpose(0, 2, 3, 4, 1)               # (N, Ho, Wo, k*k, C)
    return p.reshape(n, ho, wo, k * k * c)


# -----------------------------------------------------------------------------
# Fused Pallas kernel: conv(im2col GEMM) + bias/BN + ReLU + 3x3/s2 max-pool
# -----------------------------------------------------------------------------
def _conv_bn_relu_pool_kernel(p_ref, w_ref, scale_ref, shift_ref, mask_ref, o_ref,
                              *, hh, wh, hp, wp):
    """One image per grid step.

    p_ref:     (1, M, K)         bf16 patches, rows ordered (h_phase, h_idx,
                                 w_phase, w_idx); M = 2*hh*2*wh, K = Cin*7*7
    w_ref:     (K, Cpad)         bf16 reshaped conv weight (Cout padded to 128x)
    scale_ref: (1, Cpad)         f32  gamma / sqrt(var + eps)
    shift_ref: (1, Cpad)         f32  (conv_bias - mean) * scale + beta
    mask_ref:  (M, 1)            f32  1 for real output pixels, 0 for pad rows
    o_ref:     (1, hp, wp, Cpad) f32  pooled output (lane-dense channels)
    """
    # im2col GEMM on the MXU, f32 accumulation, fused scale/shift + ReLU + mask.
    acc = jnp.dot(p_ref[0], w_ref[...], preferred_element_type=jnp.float32)
    y = jnp.maximum(acc * scale_ref[...] + shift_ref[...], 0.0) * mask_ref[...]

    cpad = y.shape[-1]
    # Free reinterpretation: (M, Cpad) -> (h_phase*hh + h_idx, w_phase, w_idx, Cpad)
    # (wh is a multiple of 8 and the lane dim is untouched).
    y = y.reshape(2 * hh, 2, wh, cpad)

    # Separable max-pool, W direction: window j takes columns {2j, 2j+1, 2j+2}.
    w_even = y[:, 0]                                   # output cols 0, 2, 4, ...
    w_odd = y[:, 1]                                    # output cols 1, 3, 5, ...
    mw = jnp.maximum(jnp.maximum(w_even[:, :wp], w_odd[:, :wp]),
                     w_even[:, 1:wp + 1])              # (2*hh, wp, Cpad)

    # H direction: window i takes rows {2i, 2i+1, 2i+2}.
    h_even = mw[:hh]                                   # output rows 0, 2, 4, ...
    h_odd = mw[hh:]                                    # output rows 1, 3, 5, ...
    m = jnp.maximum(jnp.maximum(h_even[:hp], h_odd[:hp]),
                    h_even[1:hp + 1])                  # (hp, wp, Cpad)

    o_ref[0] = m.astype(o_ref.dtype)


# -----------------------------------------------------------------------------
# Wrapper (parameter folding + layout plumbing, all cheap XLA ops)
# -----------------------------------------------------------------------------
def sqnxt_init_block(x_nchw, params, eps=1e-5):
    """Forward pass of SqnxtInitBlock.  Input/output are NCHW float32."""
    w, b, gamma, beta, mean, var = (params[key] for key in
                                    ("w", "b", "gamma", "beta", "mean", "var"))
    n, cin, h, wd = x_nchw.shape
    cout = w.shape[0]
    cpad = _round_up(cout, 128)                  # lane-dense GEMM / pool output

    ksz, stride, pad = 7, 2, 1
    ho = (h + 2 * pad - ksz) // stride + 1
    wo = (wd + 2 * pad - ksz) // stride + 1
    hp, wp = _pool_out_size(ho), _pool_out_size(wo)
    hh = hp + 1                                  # even-phase H rows needed (major dim)
    wh = _round_up(wp + 1, 8)                    # even-phase W cols (sublane-aligned)
    m_rows = 2 * hh * 2 * wh
    kdim = ksz * ksz * cin

    # ---- im2col in bf16 (XLA side), rows re-ordered (h_phase, h_idx, w_phase, w_idx)
    # TODO(synk): move to implicit in-kernel im2col to drop the patch HBM traffic.
    patches = _im2col_nhwk(x_nchw.astype(jnp.bfloat16), ksz, stride, pad)
    patches = jnp.pad(patches, ((0, 0), (0, 2 * hh - ho), (0, 2 * wh - wo), (0, 0)))
    patches = patches.reshape(n, hh, 2, wh, 2, kdim).transpose(0, 2, 1, 4, 3, 5)
    patches = patches.reshape(n, m_rows, kdim)

    # Row validity mask (static, built with numpy): 1 for real output pixels.
    ph_ = np.arange(2)[:, None, None, None]
    ih_ = np.arange(hh)[None, :, None, None]
    pw_ = np.arange(2)[None, None, :, None]
    iw_ = np.arange(wh)[None, None, None, :]
    valid = ((2 * ih_ + ph_) < ho) & ((2 * iw_ + pw_) < wo)
    rowmask = jnp.asarray(valid.reshape(m_rows, 1).astype(np.float32))

    # Folded conv weight / bias / BatchNorm (inference, running statistics).
    w2 = w.transpose(2, 3, 1, 0).reshape(kdim, cout)             # rows (kh, kw, ci)
    w2 = jnp.pad(w2, ((0, 0), (0, cpad - cout))).astype(jnp.bfloat16)
    scale = gamma / jnp.sqrt(var + eps)
    shift = (b - mean) * scale + beta
    scale = jnp.pad(scale, (0, cpad - cout)).reshape(1, cpad).astype(jnp.float32)
    shift = jnp.pad(shift, (0, cpad - cout)).reshape(1, cpad).astype(jnp.float32)

    kernel = functools.partial(_conv_bn_relu_pool_kernel, hh=hh, wh=wh, hp=hp, wp=wp)
    out = pl.pallas_call(
        kernel,
        out_shape=jax.ShapeDtypeStruct((n, hp, wp, cpad), jnp.float32),
        grid=(n,),
        in_specs=[
            pl.BlockSpec((1, m_rows, kdim), lambda i: (i, 0, 0)),   # patches: streamed
            pl.BlockSpec((kdim, cpad), lambda i: (0, 0)),           # weight:  resident
            pl.BlockSpec((1, cpad), lambda i: (0, 0)),              # scale:   resident
            pl.BlockSpec((1, cpad), lambda i: (0, 0)),              # shift:   resident
            pl.BlockSpec((m_rows, 1), lambda i: (0, 0)),            # rowmask: resident
        ],
        out_specs=pl.BlockSpec((1, hp, wp, cpad), lambda i: (i, 0, 0, 0)),
        compiler_params=pltpu.CompilerParams(
            dimension_semantics=("parallel",)),
        cost_estimate=pl.CostEstimate(
            flops=2 * n * m_rows * kdim * cpad,
            transcendentals=0,
            bytes_accessed=(n * m_rows * kdim * 2 + kdim * cpad * 2
                            + 2 * cpad * 4 + m_rows * 4
                            + n * hp * wp * cpad * 4)),
    )(patches, w2, scale, shift, rowmask)

    # Strip channel padding + NCHW transpose on the tiny pooled output.
    return out[:, :, :, :cout].transpose(0, 3, 1, 2)


# -----------------------------------------------------------------------------
# Pure-JAX reference (bf16 conv operands to match the kernel's MXU precision)
# -----------------------------------------------------------------------------
def reference(x, params, eps=1e-5):
    w, b, gamma, beta, mean, var = (params[key] for key in
                                    ("w", "b", "gamma", "beta", "mean", "var"))
    y = jax.lax.conv_general_dilated(
        x.astype(jnp.bfloat16), w.astype(jnp.bfloat16),
        window_strides=(2, 2), padding=((1, 1), (1, 1)),
        dimension_numbers=("NCHW", "OIHW", "NCHW"),
        preferred_element_type=jnp.float32)
    y = y + b[None, :, None, None]
    y = ((y - mean[None, :, None, None])
         / jnp.sqrt(var + eps)[None, :, None, None]
         * gamma[None, :, None, None] + beta[None, :, None, None])
    y = jnp.maximum(y, 0.0)
    _, _, ho, wo = y.shape
    hp, wp = _pool_out_size(ho), _pool_out_size(wo)
    yp = jnp.pad(y, ((0, 0), (0, 0),
                     (0, 2 * (hp - 1) + 3 - ho),
                     (0, 2 * (wp - 1) + 3 - wo)),
                 constant_values=-jnp.inf)
    return jax.lax.reduce_window(yp, -jnp.inf, jax.lax.max,
                                 (1, 1, 3, 3), (1, 1, 2, 2), "VALID")


# -----------------------------------------------------------------------------
# Main
# -----------------------------------------------------------------------------
if __name__ == "__main__":
    N, CIN, COUT, HW = 2, 3, 64, 56   # small SqueezeNext-like stem shapes

    key = jax.random.PRNGKey(0)
    k_x, k_w, k_b, k_g, k_be, k_m, k_v = jax.random.split(key, 7)

    x = jax.random.normal(k_x, (N, CIN, HW, HW), dtype=jnp.float32)

    params = {
        "w": jax.random.normal(k_w, (COUT, CIN, 7, 7), dtype=jnp.float32) * 0.1,
        "b": jax.random.normal(k_b, (COUT,), dtype=jnp.float32) * 0.1,
        "gamma": 1.0 + 0.1 * jax.random.normal(k_g, (COUT,), dtype=jnp.float32),
        "beta": 0.1 * jax.random.normal(k_be, (COUT,), dtype=jnp.float32),
        "mean": 0.1 * jax.random.normal(k_m, (COUT,), dtype=jnp.float32),
        "var": 0.5 + jnp.abs(jax.random.normal(k_v, (COUT,), dtype=jnp.float32)),
    }

    out = jax.block_until_ready(jax.jit(sqnxt_init_block)(x, params))
    ref = jax.block_until_ready(reference(x, params))

    assert out.shape == ref.shape, (out.shape, ref.shape)
    np.testing.assert_allclose(np.asarray(out), np.asarray(ref),
                               rtol=1e-3, atol=1e-3)
    print("KERNEL_OK")
</pallas_src>

<mosaic_0001>
module attributes {stable_mosaic.version = 11 : i64} {
  func.func @_conv_bn_relu_pool_kernel(%arg0: i32, %arg1: memref<1x896x147xbf16, #tpu.memory_space<vmem>>, %arg2: memref<147x128xbf16, #tpu.memory_space<vmem>>, %arg3: memref<1x128xf32, #tpu.memory_space<vmem>>, %arg4: memref<1x128xf32, #tpu.memory_space<vmem>>, %arg5: memref<896x1xf32, #tpu.memory_space<vmem>>, %arg6: memref<1x13x13x128xf32, #tpu.memory_space<vmem>>) attributes {dimension_semantics = [#tpu.dimension_semantics<parallel>], iteration_bounds = array<i64: 2>, scalar_prefetch = 0 : i64, scratch_operands = 0 : i64, tpu.core_type = #tpu.core_type<tc>, window_params = [{transform_indices = @transform_0, window_bounds = array<i64: 1, 896, 147>}, {pipeline_mode = #tpu.pipeline_mode<synchronous>, transform_indices = @transform_1, window_bounds = array<i64: 147, 128>}, {pipeline_mode = #tpu.pipeline_mode<synchronous>, transform_indices = @transform_2, window_bounds = array<i64: 1, 128>}, {pipeline_mode = #tpu.pipeline_mode<synchronous>, transform_indices = @transform_3, window_bounds = array<i64: 1, 128>}, {pipeline_mode = #tpu.pipeline_mode<synchronous>, transform_indices = @transform_4, window_bounds = array<i64: 896, 1>}, {transform_indices = @transform_5, window_bounds = array<i64: 1, 13, 13, 128>}]} {
    %c0 = arith.constant 0 : index
    %c0_0 = arith.constant 0 : index
    %c0_1 = arith.constant 0 : index
    %0 = vector.load %arg1[%c0, %c0_0, %c0_1] : memref<1x896x147xbf16, #tpu.memory_space<vmem>>, vector<1x896x147xbf16>
    %1 = vector.shape_cast %0 : vector<1x896x147xbf16> to vector<896x147xbf16>
    %c0_2 = arith.constant 0 : index
    %c0_3 = arith.constant 0 : index
    %2 = vector.load %arg2[%c0_2, %c0_3] : memref<147x128xbf16, #tpu.memory_space<vmem>>, vector<147x128xbf16>
    %cst = arith.constant dense<0.000000e+00> : vector<896x128xf32>
    %3 = tpu.matmul %1, %2, %cst {dimension_numbers = #tpu.dot_dimension_numbers<[1], [0], [0], [1], [0, 0, 1, 1], [], []>} : vector<896x147xbf16>, vector<147x128xbf16>, vector<896x128xf32> -> vector<896x128xf32>
    %c0_4 = arith.constant 0 : index
    %c0_5 = arith.constant 0 : index
    %4 = vector.load %arg3[%c0_4, %c0_5] : memref<1x128xf32, #tpu.memory_space<vmem>>, vector<1x128xf32>
    %5 = vector.broadcast %4 : vector<1x128xf32> to vector<896x128xf32>
    %6 = arith.mulf %3, %5 : vector<896x128xf32>
    %c0_6 = arith.constant 0 : index
    %c0_7 = arith.constant 0 : index
    %7 = vector.load %arg4[%c0_6, %c0_7] : memref<1x128xf32, #tpu.memory_space<vmem>>, vector<1x128xf32>
    %8 = vector.broadcast %7 : vector<1x128xf32> to vector<896x128xf32>
    %9 = arith.addf %6, %8 : vector<896x128xf32>
    %cst_8 = arith.constant 0.000000e+00 : f32
    %10 = vector.broadcast %cst_8 : f32 to vector<896x128xf32>
    %11 = arith.maximumf %9, %10 : vector<896x128xf32>
    %c0_9 = arith.constant 0 : index
    %c0_10 = arith.constant 0 : index
    %12 = vector.load %arg5[%c0_9, %c0_10] : memref<896x1xf32, #tpu.memory_space<vmem>>, vector<896x1xf32>
    %13 = vector.broadcast %12 : vector<896x1xf32> to vector<896x128xf32>
    %14 = arith.mulf %11, %13 : vector<896x128xf32>
    %15 = vector.shape_cast %14 : vector<896x128xf32> to vector<28x2x16x128xf32>
    %16 = vector.extract_strided_slice %15 {offsets = [0, 0, 0, 0], sizes = [28, 1, 16, 128], strides = [1, 1, 1, 1]} : vector<28x2x16x128xf32> to vector<28x1x16x128xf32>
    %17 = vector.shape_cast %16 : vector<28x1x16x128xf32> to vector<28x16x128xf32>
    %18 = vector.extract_strided_slice %15 {offsets = [0, 1, 0, 0], sizes = [28, 1, 16, 128], strides = [1, 1, 1, 1]} : vector<28x2x16x128xf32> to vector<28x1x16x128xf32>
    %19 = vector.shape_cast %18 : vector<28x1x16x128xf32> to vector<28x16x128xf32>
    %20 = vector.extract_strided_slice %17 {offsets = [0, 0, 0], sizes = [28, 13, 128], strides = [1, 1, 1]} : vector<28x16x128xf32> to vector<28x13x128xf32>
    %21 = vector.extract_strided_slice %19 {offsets = [0, 0, 0], sizes = [28, 13, 128], strides = [1, 1, 1]} : vector<28x16x128xf32> to vector<28x13x128xf32>
    %22 = arith.maximumf %20, %21 : vector<28x13x128xf32>
    %23 = vector.extract_strided_slice %17 {offsets = [0, 1, 0], sizes = [28, 13, 128], strides = [1, 1, 1]} : vector<28x16x128xf32> to vector<28x13x128xf32>
    %24 = arith.maximumf %22, %23 : vector<28x13x128xf32>
    %25 = vector.extract_strided_slice %24 {offsets = [0, 0, 0], sizes = [14, 13, 128], strides = [1, 1, 1]} : vector<28x13x128xf32> to vector<14x13x128xf32>
    %26 = vector.extract_strided_slice %24 {offsets = [14, 0, 0], sizes = [14, 13, 128], strides = [1, 1, 1]} : vector<28x13x128xf32> to vector<14x13x128xf32>
    %27 = vector.extract_strided_slice %25 {offsets = [0, 0, 0], sizes = [13, 13, 128], strides = [1, 1, 1]} : vector<14x13x128xf32> to vector<13x13x128xf32>
    %28 = vector.extract_strided_slice %26 {offsets = [0, 0, 0], sizes = [13, 13, 128], strides = [1, 1, 1]} : vector<14x13x128xf32> to vector<13x13x128xf32>
    %29 = arith.maximumf %27, %28 : vector<13x13x128xf32>
    %30 = vector.extract_strided_slice %25 {offsets = [1, 0, 0], sizes = [13, 13, 128], strides = [1, 1, 1]} : vector<14x13x128xf32> to vector<13x13x128xf32>
    %31 = arith.maximumf %29, %30 : vector<13x13x128xf32>
    %c0_11 = arith.constant 0 : index
    %c0_12 = arith.constant 0 : index
    %c0_13 = arith.constant 0 : index
    %c0_14 = arith.constant 0 : index
    %32 = vector.load %arg6[%c0_11, %c0_12, %c0_13, %c0_14] : memref<1x13x13x128xf32, #tpu.memory_space<vmem>>, vector<1x13x13x128xf32>
    %33 = vector.shape_cast %32 : vector<1x13x13x128xf32> to vector<13x13x128xf32>
    %34 = vector.shape_cast %31 : vector<13x13x128xf32> to vector<1x13x13x128xf32>
    tpu.vector_store %arg6[%c0_11, %c0_12, %c0_13, %c0_14], %34 {strides = array<i32>} : memref<1x13x13x128xf32, #tpu.memory_space<vmem>>, vector<1x13x13x128xf32>,
    return
  }
  func.func @transform_0(%arg0: i32) -> (i32, i32, i32) {
    %c0_i32 = arith.constant 0 : i32
    %c0_i32_0 = arith.constant 0 : i32
    %c0_i32_1 = arith.constant 0 : i32
    return %arg0, %c0_i32, %c0_i32_0 : i32, i32, i32
  }
  func.func @transform_1(%arg0: i32) -> (i32, i32) {
    %c0_i32 = arith.constant 0 : i32
    %c0_i32_0 = arith.constant 0 : i32
    %c0_i32_1 = arith.constant 0 : i32
    return %c0_i32, %c0_i32_0 : i32, i32
  }
  func.func @transform_2(%arg0: i32) -> (i32, i32) {
    %c0_i32 = arith.constant 0 : i32
    %c0_i32_0 = arith.constant 0 : i32
    %c0_i32_1 = arith.constant 0 : i32
    return %c0_i32, %c0_i32_0 : i32, i32
  }
  func.func @transform_3(%arg0: i32) -> (i32, i32) {
    %c0_i32 = arith.constant 0 : i32
    %c0_i32_0 = arith.constant 0 : i32
    %c0_i32_1 = arith.constant 0 : i32
    return %c0_i32, %c0_i32_0 : i32, i32
  }
  func.func @transform_4(%arg0: i32) -> (i32, i32) {
    %c0_i32 = arith.constant 0 : i32
    %c0_i32_0 = arith.constant 0 : i32
    %c0_i32_1 = arith.constant 0 : i32
    return %c0_i32, %c0_i32_0 : i32, i32
  }
  func.func @transform_5(%arg0: i32) -> (i32, i32, i32, i32) {
    %c0_i32 = arith.constant 0 : i32
    %c0_i32_0 = arith.constant 0 : i32
    %c0_i32_1 = arith.constant 0 : i32
    %c0_i32_2 = arith.constant 0 : i32
    return %arg0, %c0_i32, %c0_i32_0, %c0_i32_1 : i32, i32, i32, i32
  }
}

</mosaic_0001>

<llo_original>
// kernel: sqnxt_init_block.1
$region0: #{sqnxt_init_block.1}
  #allocation0 [shape = 'u32[]', space=smem, size = 0x4, offset = 0x4, fixed_abs, tag = 'smem constant byte address 0x4 - core index']
  #allocation1 [shape = 'u32[72,128]{1,0:T(1,128)}', space=vmem, size = 0x9000, scoped, tag = 'internal scratch']
  %s0 = inlined_call_operand.vmem [shape: bf16[2,896,147], index: 0, kind: input, shape index: {}]
  %s1 = inlined_call_operand.vmem [shape: bf16[147,128], index: 1, kind: input, shape index: {}]
  %s2 = inlined_call_operand.vmem [shape: f32[1,128], index: 2, kind: input, shape index: {}]
  %s3 = inlined_call_operand.vmem [shape: f32[1,128], index: 3, kind: input, shape index: {}]
  %s4 = inlined_call_operand.vmem [shape: f32[896,1], index: 4, kind: input, shape index: {}]
  %s5 = inlined_call_operand.vmem [shape: f32[2,13,13,128], index: 5, kind: output, shape index: {}]
  %s6 = sld [smem:[#allocation0]]
  $region53: #{sqnxt_init_block.1} parent=0
    _
  %s8 = ssub.s32 1, %s6
  %s9 = scalar_select 0, %s8, %s6
  loop: start=0, step=1, limit=4
  $region2: #{sqnxt_init_block.1} parent=0 // loop_pre_header
    _
  $region3: #{sqnxt_init_block.1} parent=0 // loop_header
    %s11 = sphi 0, %s15
    %p12 = scmp.ge.s32.totalorder %s11, 4
    %s21 = sphi 0, %s23
    %s24 = sphi 0, %s21
    %s25 = sphi 0, %s24
    %s41 = sphi 0, %s25
    %s45 = sphi 0, %s45
    %s47 = sphi 0, %s45
    %s48 = sphi 0, %s47
    %s62 = sphi 0, %s48
    %s66 = sphi 0, %s66
    %s68 = sphi 0, %s66
    %s69 = sphi 0, %s68
    %s83 = sphi 0, %s69
    %s87 = sphi 0, %s87
    %s89 = sphi 0, %s87
    %s90 = sphi 0, %s89
    %s104 = sphi 0, %s90
    %s108 = sphi 0, %s108
    %s110 = sphi 0, %s108
    %s111 = sphi 0, %s110
    %s125 = sphi 0, %s111
    %s131 = sphi 0, %s133
    %s134 = sphi 0, %s131
    %s135 = sphi 0, %s134
    %s151 = sphi 0, %s135
  $region4: #{sqnxt_init_block.1} parent=0 // loop_header_branch
    %14 = sbr.rel (%p12) target = $region8
  $region5: #{sqnxt_init_block.1} parent=0 // loop_body
    %s16 = ssub.s32 %s11, 1
    %s17 = ssub.s32 %s11, 2
    %s18 = sadd.s32 %s11, 1
    %s19 = ssub.s32 %s11, %s18
    %p20 = scmp.eq.s32.totalorder %s19, 0
    %s22 = sadd.s32 %s21, 1
    %s23 = scalar_select %p20, %s21, %s22
    %p26 = pneg %p20
    %p27 = scmp.eq.s32.totalorder %s11, 1
    %p28 = por %p26, %p27
    %p29 = scmp.ne.s32.totalorder %s21, %s24
    %p30 = scmp.eq.s32.totalorder %s11, 0
    %p31 = por %p29, %p30
    %p32 = scmp.ne.s32.totalorder %s21, %s24
    %p33 = scmp.eq.s32.totalorder %s16, 1
    %p34 = por %p32, %p33
    %p35 = scmp.ne.s32.totalorder %s24, %s25
    %p36 = scmp.eq.s32.totalorder %s16, 0
    %p37 = por %p35, %p36
    %p38 = scmp.ne.s32.totalorder %s24, %s25
    %p39 = scmp.eq.s32.totalorder %s17, 1
    %p40 = por %p38, %p39
    %p42 = scmp.ne.s32.totalorder %s25, %s41
    %p43 = scmp.eq.s32.totalorder %s17, 0
    %p44 = por %p42, %p43
    %s46 = sadd.s32 %s45, 1
    %p49 = scmp.eq.s32.totalorder %s11, 1
    %p50 = scmp.ne.s32.totalorder %s45, %s47
    %p51 = scmp.eq.s32.totalorder %s11, 0
    %p52 = por %p50, %p51
    %p53 = scmp.ne.s32.totalorder %s45, %s47
    %p54 = scmp.eq.s32.totalorder %s16, 1
    %p55 = por %p53, %p54
    %p56 = scmp.ne.s32.totalorder %s47, %s48
    %p57 = scmp.eq.s32.totalorder %s16, 0
    %p58 = por %p56, %p57
    %p59 = scmp.ne.s32.totalorder %s47, %s48
    %p60 = scmp.eq.s32.totalorder %s17, 1
    %p61 = por %p59, %p60
    %p63 = scmp.ne.s32.totalorder %s48, %s62
    %p64 = scmp.eq.s32.totalorder %s17, 0
    %p65 = por %p63, %p64
    %s67 = sadd.s32 %s66, 1
    %p70 = scmp.eq.s32.totalorder %s11, 1
    %p71 = scmp.ne.s32.totalorder %s66, %s68
    %p72 = scmp.eq.s32.totalorder %s11, 0
    %p73 = por %p71, %p72
    %p74 = scmp.ne.s32.totalorder %s66, %s68
    %p75 = scmp.eq.s32.totalorder %s16, 1
    %p76 = por %p74, %p75
    %p77 = scmp.ne.s32.totalorder %s68, %s69
    %p78 = scmp.eq.s32.totalorder %s16, 0
    %p79 = por %p77, %p78
    %p80 = scmp.ne.s32.totalorder %s68, %s69
    %p81 = scmp.eq.s32.totalorder %s17, 1
    %p82 = por %p80, %p81
    %p84 = scmp.ne.s32.totalorder %s69, %s83
    %p85 = scmp.eq.s32.totalorder %s17, 0
    %p86 = por %p84, %p85
    %s88 = sadd.s32 %s87, 1
    %p91 = scmp.eq.s32.totalorder %s11, 1
    %p92 = scmp.ne.s32.totalorder %s87, %s89
    %p93 = scmp.eq.s32.totalorder %s11, 0
    %p94 = por %p92, %p93
    %p95 = scmp.ne.s32.totalorder %s87, %s89
    %p96 = scmp.eq.s32.totalorder %s16, 1
    %p97 = por %p95, %p96
    %p98 = scmp.ne.s32.totalorder %s89, %s90
    %p99 = scmp.eq.s32.totalorder %s16, 0
    %p100 = por %p98, %p99
    %p101 = scmp.ne.s32.totalorder %s89, %s90
    %p102 = scmp.eq.s32.totalorder %s17, 1
    %p103 = por %p101, %p102
    %p105 = scmp.ne.s32.totalorder %s90, %s104
    %p106 = scmp.eq.s32.totalorder %s17, 0
    %p107 = por %p105, %p106
    %s109 = sadd.s32 %s108, 1
    %p112 = scmp.eq.s32.totalorder %s11, 1
    %p113 = scmp.ne.s32.totalorder %s108, %s110
    %p114 = scmp.eq.s32.totalorder %s11, 0
    %p115 = por %p113, %p114
    %p116 = scmp.ne.s32.totalorder %s108, %s110
    %p117 = scmp.eq.s32.totalorder %s16, 1
    %p118 = por %p116, %p117
    %p119 = scmp.ne.s32.totalorder %s110, %s111
    %p120 = scmp.eq.s32.totalorder %s16, 0
    %p121 = por %p119, %p120
    %p122 = scmp.ne.s32.totalorder %s110, %s111
    %p123 = scmp.eq.s32.totalorder %s17, 1
    %p124 = por %p122, %p123
    %p126 = scmp.ne.s32.totalorder %s111, %s125
    %p127 = scmp.eq.s32.totalorder %s17, 0
    %p128 = por %p126, %p127
    %s129 = ssub.s32 %s11, %s18
    %p130 = scmp.eq.s32.totalorder %s129, 0
    %s132 = sadd.s32 %s131, 1
    %s133 = scalar_select %p130, %s131, %s132
    %p136 = pneg %p130
    %p137 = scmp.eq.s32.totalorder %s11, 1
    %p138 = por %p136, %p137
    %p139 = scmp.ne.s32.totalorder %s131, %s134
    %p140 = scmp.eq.s32.totalorder %s11, 0
    %p141 = por %p139, %p140
    %p142 = scmp.ne.s32.totalorder %s131, %s134
    %p143 = scmp.eq.s32.totalorder %s16, 1
    %p144 = por %p142, %p143
    %p145 = scmp.ne.s32.totalorder %s134, %s135
    %p146 = scmp.eq.s32.totalorder %s16, 0
    %p147 = por %p145, %p146
    %p148 = scmp.ne.s32.totalorder %s134, %s135
    %p149 = scmp.eq.s32.totalorder %s17, 1
    %p150 = por %p148, %p149
    %p152 = scmp.ne.s32.totalorder %s135, %s151
    %p153 = scmp.eq.s32.totalorder %s17, 0
    %p154 = por %p152, %p153
    %p155 = scmp.le.s32.totalorder 1, %s11
    %p156 = scmp.lt.s32.totalorder %s11, 3
    %p157 = pnand %p155, %p156
    %p158 = pneg %p157
    // Predicated region
    $region9: #{sqnxt_init_block.1} parent=5 // pred_check
      _
    $region10: #{sqnxt_init_block.1} parent=5 // pred_check_branch
      %160 = sbr.rel (%p157) target = $region12
    $region11: #{sqnxt_init_block.1} parent=5 // pred_region
      %s161 = ssub.s32 %s11, 1
      // Predicated region
      $region13: #{sqnxt_init_block.1} parent=11 // pred_check
        %p162 = pneg %p58
      $region14: #{sqnxt_init_block.1} parent=11 // pred_check_branch
        %164 = sbr.rel (%p162) target = $region16
      $region15: #{sqnxt_init_block.1} parent=11 // pred_region
        _
      $region16: #{sqnxt_init_block.1} parent=11 // pred_fallthru
        _
      // Predicated region
      $region17: #{sqnxt_init_block.1} parent=11 // pred_check
        %p165 = pneg %p79
      $region18: #{sqnxt_init_block.1} parent=11 // pred_check_branch
        %167 = sbr.rel (%p165) target = $region20
      $region19: #{sqnxt_init_block.1} parent=11 // pred_region
        _
      $region20: #{sqnxt_init_block.1} parent=11 // pred_fallthru
        _
      // Predicated region
      $region21: #{sqnxt_init_block.1} parent=11 // pred_check
        %p168 = pneg %p100
      $region22: #{sqnxt_init_block.1} parent=11 // pred_check_branch
        %170 = sbr.rel (%p168) target = $region24
      $region23: #{sqnxt_init_block.1} parent=11 // pred_region
        _
      $region24: #{sqnxt_init_block.1} parent=11 // pred_fallthru
        _
      // Predicated region
      $region25: #{sqnxt_init_block.1} parent=11 // pred_check
        %p171 = pneg %p121
      $region26: #{sqnxt_init_block.1} parent=11 // pred_check_branch
        %173 = sbr.rel (%p171) target = $region28
      $region27: #{sqnxt_init_block.1} parent=11 // pred_region
        _
      $region28: #{sqnxt_init_block.1} parent=11 // pred_fallthru
        _
    $region12: #{sqnxt_init_block.1} parent=5 // pred_fallthru
      _
    %p174 = scmp.lt.s32.totalorder %s11, 2
    // Predicated region
    $region29: #{sqnxt_init_block.1} parent=5 // pred_check
      %p175 = pneg %p174
    $region30: #{sqnxt_init_block.1} parent=5 // pred_check_branch
      %177 = sbr.rel (%p175) target = $region32
    $region31: #{sqnxt_init_block.1} parent=5 // pred_region
      // Predicated region
      $region33: #{sqnxt_init_block.1} parent=31 // pred_check
        %p178 = pneg %p31
      $region34: #{sqnxt_init_block.1} parent=31 // pred_check_branch
        %180 = sbr.rel (%p178) target = $region36
      $region35: #{sqnxt_init_block.1} parent=31 // pred_region
        %p181 = scmp.lt.s32.totalorder %s11, 1
        %s182 = scalar_select %p181, %s11, 1
        %s183 = smul.addr %s182, 224
        %s184 = smul.addr %s183, 4
        %s185 = scalar_lea.vmem %s0, %s184
      $region36: #{sqnxt_init_block.1} parent=31 // pred_fallthru
        _
    $region32: #{sqnxt_init_block.1} parent=5 // pred_fallthru
      _
    %p186 = scmp.le.s32.totalorder 1, %s11
    %p187 = scmp.lt.s32.totalorder %s11, 3
    %p188 = pnand %p186, %p187
    %p189 = pneg %p188
    // Predicated region
    $region37: #{sqnxt_init_block.1} parent=5 // pred_check
      _
    $region38: #{sqnxt_init_block.1} parent=5 // pred_check_branch
      %191 = sbr.rel (%p188) target = $region40
    $region39: #{sqnxt_init_block.1} parent=5 // pred_region
      %s192 = ssub.s32 %s11, 1
      %p193 = scmp.lt.s32.totalorder %s16, 1
      %s194 = scalar_select %p193, %s16, 1
      %s195 = smul.addr %s194, 224
      %s196 = smul.addr %s195, 4
      %s197 = scalar_lea.vmem %s0, %s196
      %p198 = pneg %p37
      %p199 = pneg %p34
      %p200 = pneg %p58
      %p201 = pneg %p55
      %p202 = pneg %p79
      %p203 = pneg %p76
      %p204 = pneg %p100
      %p205 = pneg %p97
      %p206 = pneg %p121
      %p207 = pneg %p118
      %p208 = pneg %p147
      %p209 = pneg %p144
      %p210 = scmp.lt.s32.totalorder %s16, 1
      %s211 = scalar_select %p210, %s16, 1
      %s212 = smul.addr %s211, 26
      %s213 = smul.addr %s212, 8
      %s214 = scalar_lea.vmem %s5, %s213
      %p215 = scmp.lt.s32.totalorder %s16, 1
      %s216 = scalar_select %p215, %s16, 1
      %s217 = smul.addr %s216, 224
      %s218 = smul.addr %s217, 4
      %s219 = scalar_lea.vmem %s0, %s218
      %p220 = scmp.lt.s32.totalorder %s16, 1
      %s221 = scalar_select %p220, %s16, 1
      %s222 = smul.addr %s221, 26
      %s223 = smul.addr %s222, 8
      %s224 = scalar_lea.vmem %s5, %s223
      %v226 = vld [vmem:[%s219] sm:$0xff]
      %v227 = vld [vmem:[%s219 + $0x8] sm:$0xff]
      %v228 = vld [vmem:[%s219 + $0x10] sm:$0xff]
      %v229 = vld [vmem:[%s219 + $0x18] sm:$0xff]
      %v230 = vld [vmem:[%s219 + $0x20] sm:$0xff]
      %v231 = vld [vmem:[%s219 + $0x28] sm:$0xff]
      %v232 = vld [vmem:[%s219 + $0x30] sm:$0xff]
      %v233 = vld [vmem:[%s219 + $0x38] sm:$0xff]
      %v234 = vld [vmem:[%s219 + $0x40] sm:$0xff]
      %v235 = vld [vmem:[%s219 + $0x48] sm:$0xff]
      %v236 = vld [vmem:[%s219 + $0x50] sm:$0xff]
      %v237 = vld [vmem:[%s219 + $0x58] sm:$0xff]
      %v238 = vld [vmem:[%s219 + $0x60] sm:$0xff]
      %v239 = vld [vmem:[%s219 + $0x68] sm:$0xff]
      %v240 = vld [vmem:[%s219 + $0x70] sm:$0xff]
      %v241 = vld [vmem:[%s219 + $0x78] sm:$0xff]
      %v242 = vld [vmem:[%s219 + $0x80] sm:$0xff]
      %v243 = vld [vmem:[%s219 + $0x88] sm:$0xff]
      %v244 = vld [vmem:[%s219 + $0x90] sm:$0xff]
      %v245 = vld [vmem:[%s219 + $0x98] sm:$0xff]
      %v246 = vld [vmem:[%s219 + $0xa0] sm:$0xff]
      %v247 = vld [vmem:[%s219 + $0xa8] sm:$0xff]
      %v248 = vld [vmem:[%s219 + $0xb0] sm:$0xff]
      %v249 = vld [vmem:[%s219 + $0xb8] sm:$0xff]
      %v250 = vld [vmem:[%s219 + $0xc0] sm:$0xff]
      %v251 = vld [vmem:[%s219 + $0xc8] sm:$0xff]
      %v252 = vld [vmem:[%s219 + $0xd0] sm:$0xff]
      %v253 = vld [vmem:[%s219 + $0xd8] sm:$0xff]
      %v254 = vld [vmem:[%s219 + $0xe0] sm:$0xff]
      %v255 = vld [vmem:[%s219 + $0xe8] sm:$0xff]
      %v256 = vld [vmem:[%s219 + $0xf0] sm:$0xff]
      %v257 = vld [vmem:[%s219 + $0xf8] sm:$0xff]
      %v258 = vld [vmem:[%s219 + $0x100] sm:$0xff]
      %v259 = vld [vmem:[%s219 + $0x108] sm:$0xff]
      %v260 = vld [vmem:[%s219 + $0x110] sm:$0xff]
      %v261 = vld [vmem:[%s219 + $0x118] sm:$0xff]
      %v262 = vld [vmem:[%s219 + $0x120] sm:$0xff]
      %v263 = vld [vmem:[%s219 + $0x128] sm:$0xff]
      %v264 = vld [vmem:[%s219 + $0x130] sm:$0xff]
      %v265 = vld [vmem:[%s219 + $0x138] sm:$0xff]
      %v266 = vld [vmem:[%s219 + $0x140] sm:$0xff]
      %v267 = vld [vmem:[%s219 + $0x148] sm:$0xff]
      %v268 = vld [vmem:[%s219 + $0x150] sm:$0xff]
      %v269 = vld [vmem:[%s219 + $0x158] sm:$0xff]
      %v270 = vld [vmem:[%s219 + $0x160] sm:$0xff]
      %v271 = vld [vmem:[%s219 + $0x168] sm:$0xff]
      %v272 = vld [vmem:[%s219 + $0x170] sm:$0xff]
      %v273 = vld [vmem:[%s219 + $0x178] sm:$0xff]
      %v274 = vld [vmem:[%s219 + $0x180] sm:$0xff]
      %v275 = vld [vmem:[%s219 + $0x188] sm:$0xff]
      %v276 = vld [vmem:[%s219 + $0x190] sm:$0xff]
      %v277 = vld [vmem:[%s219 + $0x198] sm:$0xff]
      %v278 = vld [vmem:[%s219 + $0x1a0] sm:$0xff]
      %v279 = vld [vmem:[%s219 + $0x1a8] sm:$0xff]
      %v280 = vld [vmem:[%s219 + $0x1b0] sm:$0xff]
      %v281 = vld [vmem:[%s219 + $0x1b8] sm:$0xff]
      %v282 = vld [vmem:[%s219 + $0x1c0] sm:$0xff]
      %v283 = vld [vmem:[%s219 + $0x1c8] sm:$0xff]
      %v284 = vld [vmem:[%s219 + $0x1d0] sm:$0xff]
      %v285 = vld [vmem:[%s219 + $0x1d8] sm:$0xff]
      %v286 = vld [vmem:[%s219 + $0x1e0] sm:$0xff]
      %v287 = vld [vmem:[%s219 + $0x1e8] sm:$0xff]
      %v288 = vld [vmem:[%s219 + $0x1f0] sm:$0xff]
      %v289 = vld [vmem:[%s219 + $0x1f8] sm:$0xff]
      %v290 = vld [vmem:[%s219 + $0x200] sm:$0xff]
      %v291 = vld [vmem:[%s219 + $0x208] sm:$0xff]
      %v292 = vld [vmem:[%s219 + $0x210] sm:$0xff]
      %v293 = vld [vmem:[%s219 + $0x218] sm:$0xff]
      %v294 = vld [vmem:[%s219 + $0x220] sm:$0xff]
      %v295 = vld [vmem:[%s219 + $0x228] sm:$0xff]
      %v296 = vld [vmem:[%s219 + $0x230] sm:$0xff]
      %v297 = vld [vmem:[%s219 + $0x238] sm:$0xff]
      %v298 = vld [vmem:[%s219 + $0x240] sm:$0xff]
      %v299 = vld [vmem:[%s219 + $0x248] sm:$0xff]
      %v300 = vld [vmem:[%s219 + $0x250] sm:$0xff]
      %v301 = vld [vmem:[%s219 + $0x258] sm:$0xff]
      %v302 = vld [vmem:[%s219 + $0x260] sm:$0xff]
      %v303 = vld [vmem:[%s219 + $0x268] sm:$0xff]
      %v304 = vld [vmem:[%s219 + $0x270] sm:$0xff]
      %v305 = vld [vmem:[%s219 + $0x278] sm:$0xff]
      %v306 = vld [vmem:[%s219 + $0x280] sm:$0xff]
      %v307 = vld [vmem:[%s219 + $0x288] sm:$0xff]
      %v308 = vld [vmem:[%s219 + $0x290] sm:$0xff]
      %v309 = vld [vmem:[%s219 + $0x298] sm:$0xff]
      %v310 = vld [vmem:[%s219 + $0x2a0] sm:$0xff]
      %v311 = vld [vmem:[%s219 + $0x2a8] sm:$0xff]
      %v312 = vld [vmem:[%s219 + $0x2b0] sm:$0xff]
      %v313 = vld [vmem:[%s219 + $0x2b8] sm:$0xff]
      %v314 = vld [vmem:[%s219 + $0x2c0] sm:$0xff]
      %v315 = vld [vmem:[%s219 + $0x2c8] sm:$0xff]
      %v316 = vld [vmem:[%s219 + $0x2d0] sm:$0xff]
      %v317 = vld [vmem:[%s219 + $0x2d8] sm:$0xff]
      %v318 = vld [vmem:[%s219 + $0x2e0] sm:$0xff]
      %v319 = vld [vmem:[%s219 + $0x2e8] sm:$0xff]
      %v320 = vld [vmem:[%s219 + $0x2f0] sm:$0xff]
      %v321 = vld [vmem:[%s219 + $0x2f8] sm:$0xff]
      %v322 = vld [vmem:[%s219 + $0x300] sm:$0xff]
      %v323 = vld [vmem:[%s219 + $0x308] sm:$0xff]
      %v324 = vld [vmem:[%s219 + $0x310] sm:$0xff]
      %v325 = vld [vmem:[%s219 + $0x318] sm:$0xff]
      %v326 = vld [vmem:[%s219 + $0x320] sm:$0xff]
      %v327 = vld [vmem:[%s219 + $0x328] sm:$0xff]
      %v328 = vld [vmem:[%s219 + $0x330] sm:$0xff]
      %v329 = vld [vmem:[%s219 + $0x338] sm:$0xff]
      %v330 = vld [vmem:[%s219 + $0x340] sm:$0xff]
      %v331 = vld [vmem:[%s219 + $0x348] sm:$0xff]
      %v332 = vld [vmem:[%s219 + $0x350] sm:$0xff]
      %v333 = vld [vmem:[%s219 + $0x358] sm:$0xff]
      %v334 = vld [vmem:[%s219 + $0x360] sm:$0xff]
      %v335 = vld [vmem:[%s219 + $0x368] sm:$0xff]
      %v336 = vld [vmem:[%s219 + $0x370] sm:$0xff]
      %v337 = vld [vmem:[%s219 + $0x378] sm:$0xff]
      %v338 = vld [vmem:[%s1] sm:$0xf]
      %v339 = vld [vmem:[%s1 + $0x4] sm:$0xf]
      %v340 = vld [vmem:[%s1 + $0x8] sm:$0xf]
      %v341 = vld [vmem:[%s1 + $0xc] sm:$0xf]
      %v342 = vld [vmem:[%s1 + $0x10] sm:$0xf]
      %v343 = vld [vmem:[%s1 + $0x14] sm:$0xf]
      %v344 = vld [vmem:[%s1 + $0x18] sm:$0xf]
      %v345 = vld [vmem:[%s1 + $0x1c] sm:$0xf]
      %v346 = vld [vmem:[%s1 + $0x20] sm:$0xf]
      %v347 = vld [vmem:[%s1 + $0x24] sm:$0xf]
      %v348 = vld [vmem:[%s1 + $0x28] sm:$0xf]
      %v349 = vld [vmem:[%s1 + $0x2c] sm:$0xf]
      %v350 = vld [vmem:[%s1 + $0x30] sm:$0xf]
      %v351 = vld [vmem:[%s1 + $0x34] sm:$0xf]
      %v352 = vld [vmem:[%s1 + $0x38] sm:$0xf]
      %v353 = vld [vmem:[%s1 + $0x3c] sm:$0xf]
      %v354 = vld [vmem:[%s1 + $0x40] sm:$0xf]
      %v355 = vld [vmem:[%s1 + $0x44] sm:$0xf]
      %v356 = vld [vmem:[%s1 + $0x48] sm:$0x3]
      %v469 = vunpack.c.l.b16 %v226
      %v470 = vunpack.c.h.b16 %v226
      %v471 = vunpack.c.l.b16 %v227
      %v472 = vunpack.c.h.b16 %v227
      %v473 = vunpack.c.l.b16 %v228
      %v474 = vunpack.c.h.b16 %v228
      %v475 = vunpack.c.l.b16 %v229
      %v476 = vunpack.c.h.b16 %v229
      %v477 = vunpack.c.l.b16 %v230
      %v478 = vunpack.c.h.b16 %v230
      %v479 = vunpack.c.l.b16 %v231
      %v480 = vunpack.c.h.b16 %v231
      %v481 = vunpack.c.l.b16 %v232
      %v482 = vunpack.c.h.b16 %v232
      %v483 = vunpack.c.l.b16 %v233
      %v484 = vunpack.c.h.b16 %v233
      %v485 = vunpack.c.l.b16 %v234
      %v486 = vunpack.c.h.b16 %v234
      %v487 = vunpack.c.l.b16 %v235
      %v488 = vunpack.c.h.b16 %v235
      %v489 = vunpack.c.l.b16 %v236
      %v490 = vunpack.c.h.b16 %v236
      %v491 = vunpack.c.l.b16 %v237
      %v492 = vunpack.c.h.b16 %v237
      %v493 = vunpack.c.l.b16 %v238
      %v494 = vunpack.c.h.b16 %v238
      %v495 = vunpack.c.l.b16 %v239
      %v496 = vunpack.c.h.b16 %v239
      %v497 = vunpack.c.l.b16 %v240
      %v498 = vunpack.c.h.b16 %v240
      %v499 = vunpack.c.l.b16 %v241
      %v500 = vunpack.c.h.b16 %v241
      %v501 = vunpack.c.l.b16 %v242
      %v502 = vunpack.c.h.b16 %v242
      %v503 = vunpack.c.l.b16 %v243
      %v504 = vunpack.c.h.b16 %v243
      %v505 = vunpack.c.l.b16 %v244
      %v506 = vunpack.c.h.b16 %v244
      %v507 = vunpack.c.l.b16 %v245
      %v508 = vunpack.c.h.b16 %v245
      %v509 = vunpack.c.l.b16 %v246
      %v510 = vunpack.c.h.b16 %v246
      %v511 = vunpack.c.l.b16 %v247
      %v512 = vunpack.c.h.b16 %v247
      %v513 = vunpack.c.l.b16 %v248
      %v514 = vunpack.c.h.b16 %v248
      %v515 = vunpack.c.l.b16 %v249
      %v516 = vunpack.c.h.b16 %v249
      %v517 = vunpack.c.l.b16 %v250
      %v518 = vunpack.c.h.b16 %v250
      %v519 = vunpack.c.l.b16 %v251
      %v520 = vunpack.c.h.b16 %v251
      %v521 = vunpack.c.l.b16 %v252
      %v522 = vunpack.c.h.b16 %v252
      %v523 = vunpack.c.l.b16 %v253
      %v524 = vunpack.c.h.b16 %v253
      %v525 = vunpack.c.l.b16 %v254
      %v526 = vunpack.c.h.b16 %v254
      %v527 = vunpack.c.l.b16 %v255
      %v528 = vunpack.c.h.b16 %v255
      %v529 = vunpack.c.l.b16 %v256
      %v530 = vunpack.c.h.b16 %v256
      %v531 = vunpack.c.l.b16 %v257
      %v532 = vunpack.c.h.b16 %v257
      %v533 = vunpack.c.l.b16 %v258
      %v534 = vunpack.c.h.b16 %v258
      %v535 = vunpack.c.l.b16 %v259
      %v536 = vunpack.c.h.b16 %v259
      %v537 = vunpack.c.l.b16 %v260
      %v538 = vunpack.c.h.b16 %v260
      %v539 = vunpack.c.l.b16 %v261
      %v540 = vunpack.c.h.b16 %v261
      %v541 = vunpack.c.l.b16 %v262
      %v542 = vunpack.c.h.b16 %v262
      %v543 = vunpack.c.l.b16 %v263
      %v544 = vunpack.c.h.b16 %v263
      %v545 = vunpack.c.l.b16 %v264
      %v546 = vunpack.c.h.b16 %v264
      %v547 = vunpack.c.l.b16 %v265
      %v548 = vunpack.c.h.b16 %v265
      %v549 = vunpack.c.l.b16 %v266
      %v550 = vunpack.c.h.b16 %v266
      %v551 = vunpack.c.l.b16 %v267
      %v552 = vunpack.c.h.b16 %v267
      %v553 = vunpack.c.l.b16 %v268
      %v554 = vunpack.c.h.b16 %v268
      %v555 = vunpack.c.l.b16 %v269
      %v556 = vunpack.c.h.b16 %v269
      %v557 = vunpack.c.l.b16 %v270
      %v558 = vunpack.c.h.b16 %v270
      %v559 = vunpack.c.l.b16 %v271
      %v560 = vunpack.c.h.b16 %v271
      %v561 = vunpack.c.l.b16 %v272
      %v562 = vunpack.c.h.b16 %v272
      %v563 = vunpack.c.l.b16 %v273
      %v564 = vunpack.c.h.b16 %v273
      %v565 = vunpack.c.l.b16 %v274
      %v566 = vunpack.c.h.b16 %v274
      %v567 = vunpack.c.l.b16 %v275
      %v568 = vunpack.c.h.b16 %v275
      %v569 = vunpack.c.l.b16 %v276
      %v570 = vunpack.c.h.b16 %v276
      %v571 = vunpack.c.l.b16 %v277
      %v572 = vunpack.c.h.b16 %v277
      %v573 = vunpack.c.l.b16 %v278
      %v574 = vunpack.c.h.b16 %v278
      %v575 = vunpack.c.l.b16 %v279
      %v576 = vunpack.c.h.b16 %v279
      %v577 = vunpack.c.l.b16 %v280
      %v578 = vunpack.c.h.b16 %v280
      %v579 = vunpack.c.l.b16 %v281
      %v580 = vunpack.c.h.b16 %v281
      %v581 = vunpack.c.l.b16 %v282
      %v582 = vunpack.c.h.b16 %v282
      %v583 = vunpack.c.l.b16 %v283
      %v584 = vunpack.c.h.b16 %v283
      %v585 = vunpack.c.l.b16 %v284
      %v586 = vunpack.c.h.b16 %v284
      %v587 = vunpack.c.l.b16 %v285
      %v588 = vunpack.c.h.b16 %v285
      %v589 = vunpack.c.l.b16 %v286
      %v590 = vunpack.c.h.b16 %v286
      %v591 = vunpack.c.l.b16 %v287
      %v592 = vunpack.c.h.b16 %v287
      %v593 = vunpack.c.l.b16 %v288
      %v594 = vunpack.c.h.b16 %v288
      %v595 = vunpack.c.l.b16 %v289
      %v596 = vunpack.c.h.b16 %v289
      %v597 = vunpack.c.l.b16 %v290
      %v598 = vunpack.c.h.b16 %v290
      %v599 = vunpack.c.l.b16 %v291
      %v600 = vunpack.c.h.b16 %v291
      %v601 = vunpack.c.l.b16 %v292
      %v602 = vunpack.c.h.b16 %v292
      %v603 = vunpack.c.l.b16 %v293
      %v604 = vunpack.c.h.b16 %v293
      %v605 = vunpack.c.l.b16 %v294
      %v606 = vunpack.c.h.b16 %v294
      %v607 = vunpack.c.l.b16 %v295
      %v608 = vunpack.c.h.b16 %v295
      %v609 = vunpack.c.l.b16 %v296
      %v610 = vunpack.c.h.b16 %v296
      %v611 = vunpack.c.l.b16 %v297
      %v612 = vunpack.c.h.b16 %v297
      %v613 = vunpack.c.l.b16 %v298
      %v614 = vunpack.c.h.b16 %v298
      %v615 = vunpack.c.l.b16 %v299
      %v616 = vunpack.c.h.b16 %v299
      %v617 = vunpack.c.l.b16 %v300
      %v618 = vunpack.c.h.b16 %v300
      %v619 = vunpack.c.l.b16 %v301
      %v620 = vunpack.c.h.b16 %v301
      %v621 = vunpack.c.l.b16 %v302
      %v622 = vunpack.c.h.b16 %v302
      %v623 = vunpack.c.l.b16 %v303
      %v624 = vunpack.c.h.b16 %v303
      %v625 = vunpack.c.l.b16 %v304
      %v626 = vunpack.c.h.b16 %v304
      %v627 = vunpack.c.l.b16 %v305
      %v628 = vunpack.c.h.b16 %v305
      %v629 = vunpack.c.l.b16 %v306
      %v630 = vunpack.c.h.b16 %v306
      %v631 = vunpack.c.l.b16 %v307
      %v632 = vunpack.c.h.b16 %v307
      %v633 = vunpack.c.l.b16 %v308
      %v634 = vunpack.c.h.b16 %v308
      %v635 = vunpack.c.l.b16 %v309
      %v636 = vunpack.c.h.b16 %v309
      %v637 = vunpack.c.l.b16 %v310
      %v638 = vunpack.c.h.b16 %v310
      %v639 = vunpack.c.l.b16 %v311
      %v640 = vunpack.c.h.b16 %v311
      %v641 = vunpack.c.l.b16 %v312
      %v642 = vunpack.c.h.b16 %v312
      %v643 = vunpack.c.l.b16 %v313
      %v644 = vunpack.c.h.b16 %v313
      %v645 = vunpack.c.l.b16 %v314
      %v646 = vunpack.c.h.b16 %v314
      %v647 = vunpack.c.l.b16 %v315
      %v648 = vunpack.c.h.b16 %v315
      %v649 = vunpack.c.l.b16 %v316
      %v650 = vunpack.c.h.b16 %v316
      %v651 = vunpack.c.l.b16 %v317
      %v652 = vunpack.c.h.b16 %v317
      %v653 = vunpack.c.l.b16 %v318
      %v654 = vunpack.c.h.b16 %v318
      %v655 = vunpack.c.l.b16 %v319
      %v656 = vunpack.c.h.b16 %v319
      %v657 = vunpack.c.l.b16 %v320
      %v658 = vunpack.c.h.b16 %v320
      %v659 = vunpack.c.l.b16 %v321
      %v660 = vunpack.c.h.b16 %v321
      %v661 = vunpack.c.l.b16 %v322
      %v662 = vunpack.c.h.b16 %v322
      %v663 = vunpack.c.l.b16 %v323
      %v664 = vunpack.c.h.b16 %v323
      %v665 = vunpack.c.l.b16 %v324
      %v666 = vunpack.c.h.b16 %v324
      %v667 = vunpack.c.l.b16 %v325
      %v668 = vunpack.c.h.b16 %v325
      %v669 = vunpack.c.l.b16 %v326
      %v670 = vunpack.c.h.b16 %v326
      %v671 = vunpack.c.l.b16 %v327
      %v672 = vunpack.c.h.b16 %v327
      %v673 = vunpack.c.l.b16 %v328
      %v674 = vunpack.c.h.b16 %v328
      %v675 = vunpack.c.l.b16 %v329
      %v676 = vunpack.c.h.b16 %v329
      %v677 = vunpack.c.l.b16 %v330
      %v678 = vunpack.c.h.b16 %v330
      %v679 = vunpack.c.l.b16 %v331
      %v680 = vunpack.c.h.b16 %v331
      %v681 = vunpack.c.l.b16 %v332
      %v682 = vunpack.c.h.b16 %v332
      %v683 = vunpack.c.l.b16 %v333
      %v684 = vunpack.c.h.b16 %v333
      %v685 = vunpack.c.l.b16 %v334
      %v686 = vunpack.c.h.b16 %v334
      %v687 = vunpack.c.l.b16 %v335
      %v688 = vunpack.c.h.b16 %v335
      %v689 = vunpack.c.l.b16 %v336
      %v690 = vunpack.c.h.b16 %v336
      %v691 = vunpack.c.l.b16 %v337
      %v692 = vunpack.c.h.b16 %v337
      %v693 = vpack.c.b16 %v471, %v469
      %v694 = vpack.c.b16 %v472, %v470
      %v695 = vpack.c.b16 %v475, %v473
      %v696 = vpack.c.b16 %v476, %v474
      %v697 = vpack.c.b16 %v479, %v477
      %v698 = vpack.c.b16 %v480, %v478
      %v699 = vpack.c.b16 %v483, %v481
      %v700 = vpack.c.b16 %v484, %v482
      %v701 = vpack.c.b16 %v487, %v485
      %v702 = vpack.c.b16 %v488, %v486
      %v703 = vpack.c.b16 %v491, %v489
      %v704 = vpack.c.b16 %v492, %v490
      %v705 = vpack.c.b16 %v495, %v493
      %v706 = vpack.c.b16 %v496, %v494
      %v707 = vpack.c.b16 %v499, %v497
      %v708 = vpack.c.b16 %v500, %v498
      %v709 = vpack.c.b16 %v503, %v501
      %v710 = vpack.c.b16 %v504, %v502
      %v711 = vpack.c.b16 %v507, %v505
      %v712 = vpack.c.b16 %v508, %v506
      %v713 = vpack.c.b16 %v511, %v509
      %v714 = vpack.c.b16 %v512, %v510
      %v715 = vpack.c.b16 %v515, %v513
      %v716 = vpack.c.b16 %v516, %v514
      %v717 = vpack.c.b16 %v519, %v517
      %v718 = vpack.c.b16 %v520, %v518
      %v719 = vpack.c.b16 %v523, %v521
      %v720 = vpack.c.b16 %v524, %v522
      %v721 = vpack.c.b16 %v527, %v525
      %v722 = vpack.c.b16 %v528, %v526
      %v723 = vpack.c.b16 %v531, %v529
      %v724 = vpack.c.b16 %v532, %v530
      %v725 = vpack.c.b16 %v535, %v533
      %v726 = vpack.c.b16 %v536, %v534
      %v727 = vpack.c.b16 %v539, %v537
      %v728 = vpack.c.b16 %v540, %v538
      %v729 = vpack.c.b16 %v543, %v541
      %v730 = vpack.c.b16 %v544, %v542
      %v731 = vpack.c.b16 %v547, %v545
      %v732 = vpack.c.b16 %v548, %v546
      %v733 = vpack.c.b16 %v551, %v549
      %v734 = vpack.c.b16 %v552, %v550
      %v735 = vpack.c.b16 %v555, %v553
      %v736 = vpack.c.b16 %v556, %v554
      %v737 = vpack.c.b16 %v559, %v557
      %v738 = vpack.c.b16 %v560, %v558
      %v739 = vpack.c.b16 %v563, %v561
      %v740 = vpack.c.b16 %v564, %v562
      %v741 = vpack.c.b16 %v567, %v565
      %v742 = vpack.c.b16 %v568, %v566
      %v743 = vpack.c.b16 %v571, %v569
      %v744 = vpack.c.b16 %v572, %v570
      %v745 = vpack.c.b16 %v575, %v573
      %v746 = vpack.c.b16 %v576, %v574
      %v747 = vpack.c.b16 %v579, %v577
      %v748 = vpack.c.b16 %v580, %v578
      %v749 = vpack.c.b16 %v583, %v581
      %v750 = vpack.c.b16 %v584, %v582
      %v751 = vpack.c.b16 %v587, %v585
      %v752 = vpack.c.b16 %v588, %v586
      %v753 = vpack.c.b16 %v591, %v589
      %v754 = vpack.c.b16 %v592, %v590
      %v755 = vpack.c.b16 %v595, %v593
      %v756 = vpack.c.b16 %v596, %v594
      %v757 = vpack.c.b16 %v599, %v597
      %v758 = vpack.c.b16 %v600, %v598
      %v759 = vpack.c.b16 %v603, %v601
      %v760 = vpack.c.b16 %v604, %v602
      %v761 = vpack.c.b16 %v607, %v605
      %v762 = vpack.c.b16 %v608, %v606
      %v763 = vpack.c.b16 %v611, %v609
      %v764 = vpack.c.b16 %v612, %v610
      %v765 = vpack.c.b16 %v615, %v613
      %v766 = vpack.c.b16 %v616, %v614
      %v767 = vpack.c.b16 %v619, %v617
      %v768 = vpack.c.b16 %v620, %v618
      %v769 = vpack.c.b16 %v623, %v621
      %v770 = vpack.c.b16 %v624, %v622
      %v771 = vpack.c.b16 %v627, %v625
      %v772 = vpack.c.b16 %v628, %v626
      %v773 = vpack.c.b16 %v631, %v629
      %v774 = vpack.c.b16 %v632, %v630
      %v775 = vpack.c.b16 %v635, %v633
      %v776 = vpack.c.b16 %v636, %v634
      %v777 = vpack.c.b16 %v639, %v637
      %v778 = vpack.c.b16 %v640, %v638
      %v779 = vpack.c.b16 %v643, %v641
      %v780 = vpack.c.b16 %v644, %v642
      %v781 = vpack.c.b16 %v647, %v645
      %v782 = vpack.c.b16 %v648, %v646
      %v783 = vpack.c.b16 %v651, %v649
      %v784 = vpack.c.b16 %v652, %v650
      %v785 = vpack.c.b16 %v655, %v653
      %v786 = vpack.c.b16 %v656, %v654
      %v787 = vpack.c.b16 %v659, %v657
      %v788 = vpack.c.b16 %v660, %v658
      %v789 = vpack.c.b16 %v663, %v661
      %v790 = vpack.c.b16 %v664, %v662
      %v791 = vpack.c.b16 %v667, %v665
      %v792 = vpack.c.b16 %v668, %v666
      %v793 = vpack.c.b16 %v671, %v669
      %v794 = vpack.c.b16 %v672, %v670
      %v795 = vpack.c.b16 %v675, %v673
      %v796 = vpack.c.b16 %v676, %v674
      %v797 = vpack.c.b16 %v679, %v677
      %v798 = vpack.c.b16 %v680, %v678
      %v799 = vpack.c.b16 %v683, %v681
      %v800 = vpack.c.b16 %v684, %v682
      %v801 = vpack.c.b16 %v687, %v685
      %v802 = vpack.c.b16 %v688, %v686
      %v803 = vpack.c.b16 %v691, %v689
      %v804 = vpack.c.b16 %v692, %v690
      %v880 = vunpack.c.l.b16 %v338
      %v881 = vunpack.c.l.b16 %v339
      %v882 = vunpack.c.l.b16 %v340
      %v883 = vunpack.c.l.b16 %v341
      %v884 = vunpack.c.l.b16 %v342
      %v885 = vunpack.c.l.b16 %v343
      %v886 = vunpack.c.l.b16 %v344
      %v887 = vunpack.c.l.b16 %v345
      %v888 = vunpack.c.l.b16 %v346
      %v889 = vunpack.c.l.b16 %v347
      %v890 = vunpack.c.l.b16 %v348
      %v891 = vunpack.c.l.b16 %v349
      %v892 = vunpack.c.l.b16 %v350
      %v893 = vunpack.c.l.b16 %v351
      %v894 = vunpack.c.l.b16 %v352
      %v895 = vunpack.c.l.b16 %v353
      %v896 = vunpack.c.l.b16 %v354
      %v897 = vunpack.c.l.b16 %v355
      %v898 = vunpack.c.l.b16 %v356
      %v899 = vpack.c.b16 %v881, %v880
      %v900 = vpack.c.b16 %v883, %v882
      %v901 = vpack.c.b16 %v885, %v884
      %v902 = vpack.c.b16 %v887, %v886
      %v903 = vpack.c.b16 %v889, %v888
      %v904 = vpack.c.b16 %v891, %v890
      %v905 = vpack.c.b16 %v893, %v892
      %v906 = vpack.c.b16 %v895, %v894
      %v907 = vpack.c.b16 %v897, %v896
      %v908 = vpack.c.b16 %v898, %v898
      %vm918 = vcmask 154624
      %v920 = vsel %vm918, %v694, 0
      %v923 = vsel %vm918, %v696, 0
      %v926 = vsel %vm918, %v698, 0
      %v929 = vsel %vm918, %v700, 0
      %v932 = vsel %vm918, %v702, 0
      %v935 = vsel %vm918, %v704, 0
      %v938 = vsel %vm918, %v706, 0
      %v941 = vsel %vm918, %v708, 0
      %v944 = vsel %vm918, %v710, 0
      %v947 = vsel %vm918, %v712, 0
      %v950 = vsel %vm918, %v714, 0
      %v953 = vsel %vm918, %v716, 0
      %v956 = vsel %vm918, %v718, 0
      %v959 = vsel %vm918, %v720, 0
      %v962 = vsel %vm918, %v722, 0
      %v965 = vsel %vm918, %v724, 0
      %v968 = vsel %vm918, %v726, 0
      %v971 = vsel %vm918, %v728, 0
      %v974 = vsel %vm918, %v730, 0
      %v977 = vsel %vm918, %v732, 0
      %v980 = vsel %vm918, %v734, 0
      %v983 = vsel %vm918, %v736, 0
      %v986 = vsel %vm918, %v738, 0
      %v989 = vsel %vm918, %v740, 0
      %v992 = vsel %vm918, %v742, 0
      %v995 = vsel %vm918, %v744, 0
      %v998 = vsel %vm918, %v746, 0
      %v1001 = vsel %vm918, %v748, 0
      %v1004 = vsel %vm918, %v750, 0
      %v1007 = vsel %vm918, %v752, 0
      %v1010 = vsel %vm918, %v754, 0
      %v1013 = vsel %vm918, %v756, 0
      %v1016 = vsel %vm918, %v758, 0
      %v1019 = vsel %vm918, %v760, 0
      %v1022 = vsel %vm918, %v762, 0
      %v1025 = vsel %vm918, %v764, 0
      %v1028 = vsel %vm918, %v766, 0
      %v1031 = vsel %vm918, %v768, 0
      %v1034 = vsel %vm918, %v770, 0
      %v1037 = vsel %vm918, %v772, 0
      %v1040 = vsel %vm918, %v774, 0
      %v1043 = vsel %vm918, %v776, 0
      %v1046 = vsel %vm918, %v778, 0
      %v1049 = vsel %vm918, %v780, 0
      %v1052 = vsel %vm918, %v782, 0
      %v1055 = vsel %vm918, %v784, 0
      %v1058 = vsel %vm918, %v786, 0
      %v1061 = vsel %vm918, %v788, 0
      %v1064 = vsel %vm918, %v790, 0
      %v1067 = vsel %vm918, %v792, 0
      %v1070 = vsel %vm918, %v794, 0
      %v1073 = vsel %vm918, %v796, 0
      %v1076 = vsel %vm918, %v798, 0
      %v1079 = vsel %vm918, %v800, 0
      %v1082 = vsel %vm918, %v802, 0
      %v1085 = vsel %vm918, %v804, 0
      %vm1087 = vcmask 1040384
      %vm1088 = vcmask 1041408
      %v1089 = vsel %vm1087, 4294967295, 65535
      %v1090 = vsel %vm1088, %v1089, 0
      %v1092 = vand.u32 %v908, %v1090
      %1094 = vmatpush.bf16.msra.mxu0 %v906
      %1095 = vmatpush.bf16.msra.mxu0 %v905
      %1096 = vmatpush.bf16.msra.mxu0 %v904
      %1097 = vmatpush.bf16.msra.mxu0 %v903
      %1098 = vmatpush.bf16.msra.mxu0 %v902
      %1099 = vmatpush.bf16.msra.mxu0 %v901
      %1100 = vmatpush.bf16.msra.mxu0 %v900
      %1101 = vmatpush.bf16.msra.mxu0 %v899
      %1102 = vmatmul.bf16.gmra.mxu0 %v693
      %v1103 = vpop.f32.mrf.mxu0
      %v1104 = vadd.f32 0.0, %v1103
      %v1105 = vpop.f32.mrf.mxu0
      %v1106 = vadd.f32 0.0, %v1105
      %1107 = vmatmul.bf16.gmra.mxu0 %v695
      %v1108 = vpop.f32.mrf.mxu0
      %v1109 = vadd.f32 0.0, %v1108
      %v1110 = vpop.f32.mrf.mxu0
      %v1111 = vadd.f32 0.0, %v1110
      %1112 = vmatmul.bf16.gmra.mxu0 %v697
      %v1113 = vpop.f32.mrf.mxu0
      %v1114 = vadd.f32 0.0, %v1113
      %v1115 = vpop.f32.mrf.mxu0
      %v1116 = vadd.f32 0.0, %v1115
      %1117 = vmatmul.bf16.gmra.mxu0 %v699
      %v1118 = vpop.f32.mrf.mxu0
      %v1119 = vadd.f32 0.0, %v1118
      %v1120 = vpop.f32.mrf.mxu0
      %v1121 = vadd.f32 0.0, %v1120
      %1122 = vmatmul.bf16.gmra.mxu0 %v701
      %v1123 = vpop.f32.mrf.mxu0
      %v1124 = vadd.f32 0.0, %v1123
      %v1125 = vpop.f32.mrf.mxu0
      %v1126 = vadd.f32 0.0, %v1125
      %1127 = vmatmul.bf16.gmra.mxu0 %v703
      %v1128 = vpop.f32.mrf.mxu0
      %v1129 = vadd.f32 0.0, %v1128
      %v1130 = vpop.f32.mrf.mxu0
      %v1131 = vadd.f32 0.0, %v1130
      %1132 = vmatmul.bf16.gmra.mxu0 %v705
      %v1133 = vpop.f32.mrf.mxu0
      %v1134 = vadd.f32 0.0, %v1133
      %v1135 = vpop.f32.mrf.mxu0
      %v1136 = vadd.f32 0.0, %v1135
      %1137 = vmatmul.bf16.gmra.mxu0 %v707
      %v1138 = vpop.f32.mrf.mxu0
      %v1139 = vadd.f32 0.0, %v1138
      %v1140 = vpop.f32.mrf.mxu0
      %v1141 = vadd.f32 0.0, %v1140
      %1142 = vmatmul.bf16.gmra.mxu0 %v709
      %v1143 = vpop.f32.mrf.mxu0
      %v1144 = vadd.f32 0.0, %v1143
      %v1145 = vpop.f32.mrf.mxu0
      %v1146 = vadd.f32 0.0, %v1145
      %1147 = vmatmul.bf16.gmra.mxu0 %v711
      %v1148 = vpop.f32.mrf.mxu0
      %v1149 = vadd.f32 0.0, %v1148
      %v1150 = vpop.f32.mrf.mxu0
      %v1151 = vadd.f32 0.0, %v1150
      %1152 = vmatmul.bf16.gmra.mxu0 %v713
      %v1153 = vpop.f32.mrf.mxu0
      %v1154 = vadd.f32 0.0, %v1153
      %v1155 = vpop.f32.mrf.mxu0
      %v1156 = vadd.f32 0.0, %v1155
      %1157 = vmatmul.bf16.gmra.mxu0 %v715
      %v1158 = vpop.f32.mrf.mxu0
      %v1159 = vadd.f32 0.0, %v1158
      %v1160 = vpop.f32.mrf.mxu0
      %v1161 = vadd.f32 0.0, %v1160
      %1162 = vmatmul.bf16.gmra.mxu0 %v717
      %v1163 = vpop.f32.mrf.mxu0
      %v1164 = vadd.f32 0.0, %v1163
      %v1165 = vpop.f32.mrf.mxu0
      %v1166 = vadd.f32 0.0, %v1165
      %1167 = vmatmul.bf16.gmra.mxu0 %v719
      %v1168 = vpop.f32.mrf.mxu0
      %v1169 = vadd.f32 0.0, %v1168
      %v1170 = vpop.f32.mrf.mxu0
      %v1171 = vadd.f32 0.0, %v1170
      %1172 = vmatmul.bf16.gmra.mxu0 %v721
      %v1173 = vpop.f32.mrf.mxu0
      %v1174 = vadd.f32 0.0, %v1173
      %v1175 = vpop.f32.mrf.mxu0
      %v1176 = vadd.f32 0.0, %v1175
      %1177 = vmatmul.bf16.gmra.mxu0 %v723
      %v1178 = vpop.f32.mrf.mxu0
      %v1179 = vadd.f32 0.0, %v1178
      %v1180 = vpop.f32.mrf.mxu0
      %v1181 = vadd.f32 0.0, %v1180
      %1182 = vmatmul.bf16.gmra.mxu0 %v725
      %v1183 = vpop.f32.mrf.mxu0
      %v1184 = vadd.f32 0.0, %v1183
      %v1185 = vpop.f32.mrf.mxu0
      %v1186 = vadd.f32 0.0, %v1185
      %1187 = vmatmul.bf16.gmra.mxu0 %v727
      %v1188 = vpop.f32.mrf.mxu0
      %v1189 = vadd.f32 0.0, %v1188
      %v1190 = vpop.f32.mrf.mxu0
      %v1191 = vadd.f32 0.0, %v1190
      %1192 = vmatmul.bf16.gmra.mxu0 %v729
      %v1193 = vpop.f32.mrf.mxu0
      %v1194 = vadd.f32 0.0, %v1193
      %v1195 = vpop.f32.mrf.mxu0
      %v1196 = vadd.f32 0.0, %v1195
      %1197 = vmatmul.bf16.gmra.mxu0 %v731
      %v1198 = vpop.f32.mrf.mxu0
      %v1199 = vadd.f32 0.0, %v1198
      %v1200 = vpop.f32.mrf.mxu0
      %v1201 = vadd.f32 0.0, %v1200
      %1202 = vmatmul.bf16.gmra.mxu0 %v733
      %v1203 = vpop.f32.mrf.mxu0
      %v1204 = vadd.f32 0.0, %v1203
      %v1205 = vpop.f32.mrf.mxu0
      %v1206 = vadd.f32 0.0, %v1205
      %1207 = vmatmul.bf16.gmra.mxu0 %v735
      %v1208 = vpop.f32.mrf.mxu0
      %v1209 = vadd.f32 0.0, %v1208
      %v1210 = vpop.f32.mrf.mxu0
      %v1211 = vadd.f32 0.0, %v1210
      %1212 = vmatmul.bf16.gmra.mxu0 %v737
      %v1213 = vpop.f32.mrf.mxu0
      %v1214 = vadd.f32 0.0, %v1213
      %v1215 = vpop.f32.mrf.mxu0
      %v1216 = vadd.f32 0.0, %v1215
      %1217 = vmatmul.bf16.gmra.mxu0 %v739
      %v1218 = vpop.f32.mrf.mxu0
      %v1219 = vadd.f32 0.0, %v1218
      %v1220 = vpop.f32.mrf.mxu0
      %v1221 = vadd.f32 0.0, %v1220
      %1222 = vmatmul.bf16.gmra.mxu0 %v741
      %v1223 = vpop.f32.mrf.mxu0
      %v1224 = vadd.f32 0.0, %v1223
      %v1225 = vpop.f32.mrf.mxu0
      %v1226 = vadd.f32 0.0, %v1225
      %1227 = vmatmul.bf16.gmra.mxu0 %v743
      %v1228 = vpop.f32.mrf.mxu0
      %v1229 = vadd.f32 0.0, %v1228
      %v1230 = vpop.f32.mrf.mxu0
      %v1231 = vadd.f32 0.0, %v1230
      %1232 = vmatmul.bf16.gmra.mxu0 %v745
      %v1233 = vpop.f32.mrf.mxu0
      %v1234 = vadd.f32 0.0, %v1233
      %v1235 = vpop.f32.mrf.mxu0
      %v1236 = vadd.f32 0.0, %v1235
      %1237 = vmatmul.bf16.gmra.mxu0 %v747
      %v1238 = vpop.f32.mrf.mxu0
      %v1239 = vadd.f32 0.0, %v1238
      %v1240 = vpop.f32.mrf.mxu0
      %v1241 = vadd.f32 0.0, %v1240
      %1242 = vmatmul.bf16.gmra.mxu0 %v749
      %v1243 = vpop.f32.mrf.mxu0
      %v1244 = vadd.f32 0.0, %v1243
      %v1245 = vpop.f32.mrf.mxu0
      %v1246 = vadd.f32 0.0, %v1245
      %1247 = vmatmul.bf16.gmra.mxu0 %v751
      %v1248 = vpop.f32.mrf.mxu0
      %v1249 = vadd.f32 0.0, %v1248
      %v1250 = vpop.f32.mrf.mxu0
      %v1251 = vadd.f32 0.0, %v1250
      %1252 = vmatmul.bf16.gmra.mxu0 %v753
      %v1253 = vpop.f32.mrf.mxu0
      %v1254 = vadd.f32 0.0, %v1253
      %v1255 = vpop.f32.mrf.mxu0
      %v1256 = vadd.f32 0.0, %v1255
      %1257 = vmatmul.bf16.gmra.mxu0 %v755
      %v1258 = vpop.f32.mrf.mxu0
      %v1259 = vadd.f32 0.0, %v1258
      %v1260 = vpop.f32.mrf.mxu0
      %v1261 = vadd.f32 0.0, %v1260
      %1262 = vmatmul.bf16.gmra.mxu0 %v757
      %v1263 = vpop.f32.mrf.mxu0
      %v1264 = vadd.f32 0.0, %v1263
      %v1265 = vpop.f32.mrf.mxu0
      %v1266 = vadd.f32 0.0, %v1265
      %1267 = vmatmul.bf16.gmra.mxu0 %v759
      %v1268 = vpop.f32.mrf.mxu0
      %v1269 = vadd.f32 0.0, %v1268
      %v1270 = vpop.f32.mrf.mxu0
      %v1271 = vadd.f32 0.0, %v1270
      %1272 = vmatmul.bf16.gmra.mxu0 %v761
      %v1273 = vpop.f32.mrf.mxu0
      %v1274 = vadd.f32 0.0, %v1273
      %v1275 = vpop.f32.mrf.mxu0
      %v1276 = vadd.f32 0.0, %v1275
      %1277 = vmatmul.bf16.gmra.mxu0 %v763
      %v1278 = vpop.f32.mrf.mxu0
      %v1279 = vadd.f32 0.0, %v1278
      %v1280 = vpop.f32.mrf.mxu0
      %v1281 = vadd.f32 0.0, %v1280
      %1282 = vmatmul.bf16.gmra.mxu0 %v765
      %v1283 = vpop.f32.mrf.mxu0
      %v1284 = vadd.f32 0.0, %v1283
      %v1285 = vpop.f32.mrf.mxu0
      %v1286 = vadd.f32 0.0, %v1285
      %1287 = vmatmul.bf16.gmra.mxu0 %v767
      %v1288 = vpop.f32.mrf.mxu0
      %v1289 = vadd.f32 0.0, %v1288
      %v1290 = vpop.f32.mrf.mxu0
      %v1291 = vadd.f32 0.0, %v1290
      %1292 = vmatmul.bf16.gmra.mxu0 %v769
      %v1293 = vpop.f32.mrf.mxu0
      %v1294 = vadd.f32 0.0, %v1293
      %v1295 = vpop.f32.mrf.mxu0
      %v1296 = vadd.f32 0.0, %v1295
      %1297 = vmatmul.bf16.gmra.mxu0 %v771
      %v1298 = vpop.f32.mrf.mxu0
      %v1299 = vadd.f32 0.0, %v1298
      %v1300 = vpop.f32.mrf.mxu0
      %v1301 = vadd.f32 0.0, %v1300
      %1302 = vmatmul.bf16.gmra.mxu0 %v773
      %v1303 = vpop.f32.mrf.mxu0
      %v1304 = vadd.f32 0.0, %v1303
      %v1305 = vpop.f32.mrf.mxu0
      %v1306 = vadd.f32 0.0, %v1305
      %1307 = vmatmul.bf16.gmra.mxu0 %v775
      %v1308 = vpop.f32.mrf.mxu0
      %v1309 = vadd.f32 0.0, %v1308
      %v1310 = vpop.f32.mrf.mxu0
      %v1311 = vadd.f32 0.0, %v1310
      %1312 = vmatmul.bf16.gmra.mxu0 %v777
      %v1313 = vpop.f32.mrf.mxu0
      %v1314 = vadd.f32 0.0, %v1313
      %v1315 = vpop.f32.mrf.mxu0
      %v1316 = vadd.f32 0.0, %v1315
      %1317 = vmatmul.bf16.gmra.mxu0 %v779
      %v1318 = vpop.f32.mrf.mxu0
      %v1319 = vadd.f32 0.0, %v1318
      %v1320 = vpop.f32.mrf.mxu0
      %v1321 = vadd.f32 0.0, %v1320
      %1322 = vmatmul.bf16.gmra.mxu0 %v781
      %v1323 = vpop.f32.mrf.mxu0
      %v1324 = vadd.f32 0.0, %v1323
      %v1325 = vpop.f32.mrf.mxu0
      %v1326 = vadd.f32 0.0, %v1325
      %1327 = vmatmul.bf16.gmra.mxu0 %v783
      %v1328 = vpop.f32.mrf.mxu0
      %v1329 = vadd.f32 0.0, %v1328
      %v1330 = vpop.f32.mrf.mxu0
      %v1331 = vadd.f32 0.0, %v1330
      %1332 = vmatmul.bf16.gmra.mxu0 %v785
      %v1333 = vpop.f32.mrf.mxu0
      %v1334 = vadd.f32 0.0, %v1333
      %v1335 = vpop.f32.mrf.mxu0
      %v1336 = vadd.f32 0.0, %v1335
      %1337 = vmatmul.bf16.gmra.mxu0 %v787
      %v1338 = vpop.f32.mrf.mxu0
      %v1339 = vadd.f32 0.0, %v1338
      %v1340 = vpop.f32.mrf.mxu0
      %v1341 = vadd.f32 0.0, %v1340
      %1342 = vmatmul.bf16.gmra.mxu0 %v789
      %v1343 = vpop.f32.mrf.mxu0
      %v1344 = vadd.f32 0.0, %v1343
      %v1345 = vpop.f32.mrf.mxu0
      %v1346 = vadd.f32 0.0, %v1345
      %1347 = vmatmul.bf16.gmra.mxu0 %v791
      %v1348 = vpop.f32.mrf.mxu0
      %v1349 = vadd.f32 0.0, %v1348
      %v1350 = vpop.f32.mrf.mxu0
      %v1351 = vadd.f32 0.0, %v1350
      %1352 = vmatmul.bf16.gmra.mxu0 %v793
      %v1353 = vpop.f32.mrf.mxu0
      %v1354 = vadd.f32 0.0, %v1353
      %v1355 = vpop.f32.mrf.mxu0
      %v1356 = vadd.f32 0.0, %v1355
      %1357 = vmatmul.bf16.gmra.mxu0 %v795
      %v1358 = vpop.f32.mrf.mxu0
      %v1359 = vadd.f32 0.0, %v1358
      %v1360 = vpop.f32.mrf.mxu0
      %v1361 = vadd.f32 0.0, %v1360
      %1362 = vmatmul.bf16.gmra.mxu0 %v797
      %v1363 = vpop.f32.mrf.mxu0
      %v1364 = vadd.f32 0.0, %v1363
      %v1365 = vpop.f32.mrf.mxu0
      %v1366 = vadd.f32 0.0, %v1365
      %1367 = vmatmul.bf16.gmra.mxu0 %v799
      %v1368 = vpop.f32.mrf.mxu0
      %v1369 = vadd.f32 0.0, %v1368
      %v1370 = vpop.f32.mrf.mxu0
      %v1371 = vadd.f32 0.0, %v1370
      %1372 = vmatmul.bf16.gmra.mxu0 %v801
      %v1373 = vpop.f32.mrf.mxu0
      %v1374 = vpop.f32.mrf.mxu0
      %1375 = vmatmul.bf16.gmra.mxu0 %v803
      %v1376 = vpop.f32.mrf.mxu0
      %v1377 = vpop.f32.mrf.mxu0
      %1378 = vdwg.mxu0
      %1379 = vmatpush.bf16.msra.mxu0 0
      %1380 = vmatpush.bf16.msra.mxu0 0
      %1381 = vmatpush.bf16.msra.mxu0 0
      %1382 = vmatpush.bf16.msra.mxu0 0
      %1383 = vmatpush.bf16.msra.mxu0 0
      %1384 = vmatpush.bf16.msra.mxu0 0
      %1385 = vmatpush.bf16.msra.mxu0 %v1092
      %1386 = vmatpush.bf16.msra.mxu0 %v907
      %1387 = vmatmul.bf16.gmra.mxu0 %v920
      %v1388 = vpop.f32.mrf.mxu0
      %v1389 = vadd.f32 %v1104, %v1388
      %v1390 = vpop.f32.mrf.mxu0
      %v1391 = vadd.f32 %v1106, %v1390
      %1392 = vmatmul.bf16.gmra.mxu0 %v923
      %v1393 = vpop.f32.mrf.mxu0
      %v1394 = vadd.f32 %v1109, %v1393
      %v1395 = vpop.f32.mrf.mxu0
      %v1396 = vadd.f32 %v1111, %v1395
      %1397 = vmatmul.bf16.gmra.mxu0 %v926
      %v1398 = vpop.f32.mrf.mxu0
      %v1399 = vadd.f32 %v1114, %v1398
      %v1400 = vpop.f32.mrf.mxu0
      %v1401 = vadd.f32 %v1116, %v1400
      %1402 = vmatmul.bf16.gmra.mxu0 %v929
      %v1403 = vpop.f32.mrf.mxu0
      %v1404 = vadd.f32 %v1119, %v1403
      %v1405 = vpop.f32.mrf.mxu0
      %v1406 = vadd.f32 %v1121, %v1405
      %1407 = vmatmul.bf16.gmra.mxu0 %v932
      %v1408 = vpop.f32.mrf.mxu0
      %v1409 = vadd.f32 %v1124, %v1408
      %v1410 = vpop.f32.mrf.mxu0
      %v1411 = vadd.f32 %v1126, %v1410
      %1412 = vmatmul.bf16.gmra.mxu0 %v935
      %v1413 = vpop.f32.mrf.mxu0
      %v1414 = vadd.f32 %v1129, %v1413
      %v1415 = vpop.f32.mrf.mxu0
      %v1416 = vadd.f32 %v1131, %v1415
      %1417 = vmatmul.bf16.gmra.mxu0 %v938
      %v1418 = vpop.f32.mrf.mxu0
      %v1419 = vadd.f32 %v1134, %v1418
      %v1420 = vpop.f32.mrf.mxu0
      %v1421 = vadd.f32 %v1136, %v1420
      %1422 = vmatmul.bf16.gmra.mxu0 %v941
      %v1423 = vpop.f32.mrf.mxu0
      %v1424 = vadd.f32 %v1139, %v1423
      %v1425 = vpop.f32.mrf.mxu0
      %v1426 = vadd.f32 %v1141, %v1425
      %1427 = vmatmul.bf16.gmra.mxu0 %v944
      %v1428 = vpop.f32.mrf.mxu0
      %v1429 = vadd.f32 %v1144, %v1428
      %v1430 = vpop.f32.mrf.mxu0
      %v1431 = vadd.f32 %v1146, %v1430
      %1432 = vmatmul.bf16.gmra.mxu0 %v947
      %v1433 = vpop.f32.mrf.mxu0
      %v1434 = vadd.f32 %v1149, %v1433
      %v1435 = vpop.f32.mrf.mxu0
      %v1436 = vadd.f32 %v1151, %v1435
      %1437 = vmatmul.bf16.gmra.mxu0 %v950
      %v1438 = vpop.f32.mrf.mxu0
      %v1439 = vadd.f32 %v1154, %v1438
      %v1440 = vpop.f32.mrf.mxu0
      %v1441 = vadd.f32 %v1156, %v1440
      %1442 = vmatmul.bf16.gmra.mxu0 %v953
      %v1443 = vpop.f32.mrf.mxu0
      %v1444 = vadd.f32 %v1159, %v1443
      %v1445 = vpop.f32.mrf.mxu0
      %v1446 = vadd.f32 %v1161, %v1445
      %1447 = vmatmul.bf16.gmra.mxu0 %v956
      %v1448 = vpop.f32.mrf.mxu0
      %v1449 = vadd.f32 %v1164, %v1448
      %v1450 = vpop.f32.mrf.mxu0
      %v1451 = vadd.f32 %v1166, %v1450
      %1452 = vmatmul.bf16.gmra.mxu0 %v959
      %v1453 = vpop.f32.mrf.mxu0
      %v1454 = vadd.f32 %v1169, %v1453
      %v1455 = vpop.f32.mrf.mxu0
      %v1456 = vadd.f32 %v1171, %v1455
      %1457 = vmatmul.bf16.gmra.mxu0 %v962
      %v1458 = vpop.f32.mrf.mxu0
      %v1459 = vadd.f32 %v1174, %v1458
      %v1460 = vpop.f32.mrf.mxu0
      %v1461 = vadd.f32 %v1176, %v1460
      %1462 = vmatmul.bf16.gmra.mxu0 %v965
      %v1463 = vpop.f32.mrf.mxu0
      %v1464 = vadd.f32 %v1179, %v1463
      %v1465 = vpop.f32.mrf.mxu0
      %v1466 = vadd.f32 %v1181, %v1465
      %1467 = vmatmul.bf16.gmra.mxu0 %v968
      %v1468 = vpop.f32.mrf.mxu0
      %v1469 = vadd.f32 %v1184, %v1468
      %v1470 = vpop.f32.mrf.mxu0
      %v1471 = vadd.f32 %v1186, %v1470
      %1472 = vmatmul.bf16.gmra.mxu0 %v971
      %v1473 = vpop.f32.mrf.mxu0
      %v1474 = vadd.f32 %v1189, %v1473
      %v1475 = vpop.f32.mrf.mxu0
      %v1476 = vadd.f32 %v1191, %v1475
      %1477 = vmatmul.bf16.gmra.mxu0 %v974
      %v1478 = vpop.f32.mrf.mxu0
      %v1479 = vadd.f32 %v1194, %v1478
      %v1480 = vpop.f32.mrf.mxu0
      %v1481 = vadd.f32 %v1196, %v1480
      %1482 = vmatmul.bf16.gmra.mxu0 %v977
      %v1483 = vpop.f32.mrf.mxu0
      %v1484 = vadd.f32 %v1199, %v1483
      %v1485 = vpop.f32.mrf.mxu0
      %v1486 = vadd.f32 %v1201, %v1485
      %1487 = vmatmul.bf16.gmra.mxu0 %v980
      %v1488 = vpop.f32.mrf.mxu0
      %v1489 = vadd.f32 %v1204, %v1488
      %v1490 = vpop.f32.mrf.mxu0
      %v1491 = vadd.f32 %v1206, %v1490
      %1492 = vmatmul.bf16.gmra.mxu0 %v983
      %v1493 = vpop.f32.mrf.mxu0
      %v1494 = vadd.f32 %v1209, %v1493
      %v1495 = vpop.f32.mrf.mxu0
      %v1496 = vadd.f32 %v1211, %v1495
      %1497 = vmatmul.bf16.gmra.mxu0 %v986
      %v1498 = vpop.f32.mrf.mxu0
      %v1499 = vadd.f32 %v1214, %v1498
      %v1500 = vpop.f32.mrf.mxu0
      %v1501 = vadd.f32 %v1216, %v1500
      %1502 = vmatmul.bf16.gmra.mxu0 %v989
      %v1503 = vpop.f32.mrf.mxu0
      %v1504 = vadd.f32 %v1219, %v1503
      %v1505 = vpop.f32.mrf.mxu0
      %v1506 = vadd.f32 %v1221, %v1505
      %1507 = vmatmul.bf16.gmra.mxu0 %v992
      %v1508 = vpop.f32.mrf.mxu0
      %v1509 = vadd.f32 %v1224, %v1508
      %v1510 = vpop.f32.mrf.mxu0
      %v1511 = vadd.f32 %v1226, %v1510
      %1512 = vmatmul.bf16.gmra.mxu0 %v995
      %v1513 = vpop.f32.mrf.mxu0
      %v1514 = vadd.f32 %v1229, %v1513
      %v1515 = vpop.f32.mrf.mxu0
      %v1516 = vadd.f32 %v1231, %v1515
      %1517 = vmatmul.bf16.gmra.mxu0 %v998
      %v1518 = vpop.f32.mrf.mxu0
      %v1519 = vadd.f32 %v1234, %v1518
      %v1520 = vpop.f32.mrf.mxu0
      %v1521 = vadd.f32 %v1236, %v1520
      %1522 = vmatmul.bf16.gmra.mxu0 %v1001
      %v1523 = vpop.f32.mrf.mxu0
      %v1524 = vadd.f32 %v1239, %v1523
      %v1525 = vpop.f32.mrf.mxu0
      %v1526 = vadd.f32 %v1241, %v1525
      %1527 = vmatmul.bf16.gmra.mxu0 %v1004
      %v1528 = vpop.f32.mrf.mxu0
      %v1529 = vadd.f32 %v1244, %v1528
      %v1530 = vpop.f32.mrf.mxu0
      %v1531 = vadd.f32 %v1246, %v1530
      %1532 = vmatmul.bf16.gmra.mxu0 %v1007
      %v1533 = vpop.f32.mrf.mxu0
      %v1534 = vadd.f32 %v1249, %v1533
      %v1535 = vpop.f32.mrf.mxu0
      %v1536 = vadd.f32 %v1251, %v1535
      %1537 = vmatmul.bf16.gmra.mxu0 %v1010
      %v1538 = vpop.f32.mrf.mxu0
      %v1539 = vadd.f32 %v1254, %v1538
      %v1540 = vpop.f32.mrf.mxu0
      %v1541 = vadd.f32 %v1256, %v1540
      %1542 = vmatmul.bf16.gmra.mxu0 %v1013
      %v1543 = vpop.f32.mrf.mxu0
      %v1544 = vadd.f32 %v1259, %v1543
      %v1545 = vpop.f32.mrf.mxu0
      %v1546 = vadd.f32 %v1261, %v1545
      %1547 = vmatmul.bf16.gmra.mxu0 %v1016
      %v1548 = vpop.f32.mrf.mxu0
      %v1549 = vadd.f32 %v1264, %v1548
      %v1550 = vpop.f32.mrf.mxu0
      %v1551 = vadd.f32 %v1266, %v1550
      %1552 = vmatmul.bf16.gmra.mxu0 %v1019
      %v1553 = vpop.f32.mrf.mxu0
      %v1554 = vadd.f32 %v1269, %v1553
      %v1555 = vpop.f32.mrf.mxu0
      %v1556 = vadd.f32 %v1271, %v1555
      %1557 = vmatmul.bf16.gmra.mxu0 %v1022
      %v1558 = vpop.f32.mrf.mxu0
      %v1559 = vadd.f32 %v1274, %v1558
      %v1560 = vpop.f32.mrf.mxu0
      %v1561 = vadd.f32 %v1276, %v1560
      %1562 = vmatmul.bf16.gmra.mxu0 %v1025
      %v1563 = vpop.f32.mrf.mxu0
      %v1564 = vadd.f32 %v1279, %v1563
      %v1565 = vpop.f32.mrf.mxu0
      %v1566 = vadd.f32 %v1281, %v1565
      %1567 = vmatmul.bf16.gmra.mxu0 %v1028
      %v1568 = vpop.f32.mrf.mxu0
      %v1569 = vadd.f32 %v1284, %v1568
      %v1570 = vpop.f32.mrf.mxu0
      %v1571 = vadd.f32 %v1286, %v1570
      %1572 = vmatmul.bf16.gmra.mxu0 %v1031
      %v1573 = vpop.f32.mrf.mxu0
      %v1574 = vadd.f32 %v1289, %v1573
      %v1575 = vpop.f32.mrf.mxu0
      %v1576 = vadd.f32 %v1291, %v1575
      %1577 = vmatmul.bf16.gmra.mxu0 %v1034
      %v1578 = vpop.f32.mrf.mxu0
      %v1579 = vadd.f32 %v1294, %v1578
      %v1580 = vpop.f32.mrf.mxu0
      %v1581 = vadd.f32 %v1296, %v1580
      %1582 = vmatmul.bf16.gmra.mxu0 %v1037
      %v1583 = vpop.f32.mrf.mxu0
      %v1584 = vadd.f32 %v1299, %v1583
      %v1585 = vpop.f32.mrf.mxu0
      %v1586 = vadd.f32 %v1301, %v1585
      %1587 = vmatmul.bf16.gmra.mxu0 %v1040
      %v1588 = vpop.f32.mrf.mxu0
      %v1589 = vadd.f32 %v1304, %v1588
      %v1590 = vpop.f32.mrf.mxu0
      %v1591 = vadd.f32 %v1306, %v1590
      %1592 = vmatmul.bf16.gmra.mxu0 %v1043
      %v1593 = vpop.f32.mrf.mxu0
      %v1594 = vadd.f32 %v1309, %v1593
      %v1595 = vpop.f32.mrf.mxu0
      %v1596 = vadd.f32 %v1311, %v1595
      %1597 = vmatmul.bf16.gmra.mxu0 %v1046
      %v1598 = vpop.f32.mrf.mxu0
      %v1599 = vadd.f32 %v1314, %v1598
      %v1600 = vpop.f32.mrf.mxu0
      %v1601 = vadd.f32 %v1316, %v1600
      %1602 = vmatmul.bf16.gmra.mxu0 %v1049
      %v1603 = vpop.f32.mrf.mxu0
      %v1604 = vadd.f32 %v1319, %v1603
      %v1605 = vpop.f32.mrf.mxu0
      %v1606 = vadd.f32 %v1321, %v1605
      %1607 = vmatmul.bf16.gmra.mxu0 %v1052
      %v1608 = vpop.f32.mrf.mxu0
      %v1609 = vadd.f32 %v1324, %v1608
      %v1610 = vpop.f32.mrf.mxu0
      %v1611 = vadd.f32 %v1326, %v1610
      %1612 = vmatmul.bf16.gmra.mxu0 %v1055
      %v1613 = vpop.f32.mrf.mxu0
      %v1614 = vadd.f32 %v1329, %v1613
      %v1615 = vpop.f32.mrf.mxu0
      %v1616 = vadd.f32 %v1331, %v1615
      %1617 = vmatmul.bf16.gmra.mxu0 %v1058
      %v1618 = vpop.f32.mrf.mxu0
      %v1619 = vadd.f32 %v1334, %v1618
      %v1620 = vpop.f32.mrf.mxu0
      %v1621 = vadd.f32 %v1336, %v1620
      %1622 = vmatmul.bf16.gmra.mxu0 %v1061
      %v1623 = vpop.f32.mrf.mxu0
      %v1624 = vadd.f32 %v1339, %v1623
      %v1625 = vpop.f32.mrf.mxu0
      %v1626 = vadd.f32 %v1341, %v1625
      %1627 = vmatmul.bf16.gmra.mxu0 %v1064
      %v1628 = vpop.f32.mrf.mxu0
      %v1629 = vadd.f32 %v1344, %v1628
      %v1630 = vpop.f32.mrf.mxu0
      %v1631 = vadd.f32 %v1346, %v1630
      %1632 = vmatmul.bf16.gmra.mxu0 %v1067
      %v1633 = vpop.f32.mrf.mxu0
      %v1634 = vadd.f32 %v1349, %v1633
      %v1635 = vpop.f32.mrf.mxu0
      %v1636 = vadd.f32 %v1351, %v1635
      %1637 = vmatmul.bf16.gmra.mxu0 %v1070
      %v1638 = vpop.f32.mrf.mxu0
      %v1639 = vadd.f32 %v1354, %v1638
      %v1640 = vpop.f32.mrf.mxu0
      %v1641 = vadd.f32 %v1356, %v1640
      %1642 = vmatmul.bf16.gmra.mxu0 %v1073
      %v1643 = vpop.f32.mrf.mxu0
      %v1644 = vadd.f32 %v1359, %v1643
      %v1645 = vpop.f32.mrf.mxu0
      %v1646 = vadd.f32 %v1361, %v1645
      %1647 = vmatmul.bf16.gmra.mxu0 %v1076
      %v1648 = vpop.f32.mrf.mxu0
      %v1649 = vadd.f32 %v1364, %v1648
      %v1650 = vpop.f32.mrf.mxu0
      %v1651 = vadd.f32 %v1366, %v1650
      %1652 = vmatmul.bf16.gmra.mxu0 %v1079
      %v1653 = vpop.f32.mrf.mxu0
      %v1654 = vadd.f32 %v1369, %v1653
      %v1655 = vpop.f32.mrf.mxu0
      %v1656 = vadd.f32 %v1371, %v1655
      %1657 = vmatmul.bf16.gmra.mxu0 %v1082
      %v1658 = vpop.f32.mrf.mxu0
      %v1659 = vpop.f32.mrf.mxu0
      %1660 = vmatmul.bf16.gmra.mxu0 %v1085
      %v1661 = vpop.f32.mrf.mxu0
      %v1662 = vpop.f32.mrf.mxu0
      %1663 = vdwg.mxu0
      %v1664 = vld [vmem:[%s2] sm:$0x1]
      %v1666 = vperm.slane %v1664, 0
      %v1668 = vmul.f32 %v1389, %v1666
      %v1669 = vmul.f32 %v1391, %v1666
      %v1670 = vmul.f32 %v1394, %v1666
      %v1671 = vmul.f32 %v1396, %v1666
      %v1672 = vmul.f32 %v1399, %v1666
      %v1673 = vmul.f32 %v1401, %v1666
      %v1674 = vmul.f32 %v1404, %v1666
      %v1675 = vmul.f32 %v1406, %v1666
      %v1676 = vmul.f32 %v1409, %v1666
      %v1677 = vmul.f32 %v1411, %v1666
      %v1678 = vmul.f32 %v1414, %v1666
      %v1679 = vmul.f32 %v1416, %v1666
      %v1680 = vmul.f32 %v1419, %v1666
      %v1681 = vmul.f32 %v1421, %v1666
      %v1682 = vmul.f32 %v1424, %v1666
      %v1683 = vmul.f32 %v1426, %v1666
      %v1684 = vmul.f32 %v1429, %v1666
      %v1685 = vmul.f32 %v1431, %v1666
      %v1686 = vmul.f32 %v1434, %v1666
      %v1687 = vmul.f32 %v1436, %v1666
      %v1688 = vmul.f32 %v1439, %v1666
      %v1689 = vmul.f32 %v1441, %v1666
      %v1690 = vmul.f32 %v1444, %v1666
      %v1691 = vmul.f32 %v1446, %v1666
      %v1692 = vmul.f32 %v1449, %v1666
      %v1693 = vmul.f32 %v1451, %v1666
      %v1694 = vmul.f32 %v1454, %v1666
      %v1695 = vmul.f32 %v1456, %v1666
      %v1696 = vmul.f32 %v1459, %v1666
      %v1697 = vmul.f32 %v1461, %v1666
      %v1698 = vmul.f32 %v1464, %v1666
      %v1699 = vmul.f32 %v1466, %v1666
      %v1700 = vmul.f32 %v1469, %v1666
      %v1701 = vmul.f32 %v1471, %v1666
      %v1702 = vmul.f32 %v1474, %v1666
      %v1703 = vmul.f32 %v1476, %v1666
      %v1704 = vmul.f32 %v1479, %v1666
      %v1705 = vmul.f32 %v1481, %v1666
      %v1706 = vmul.f32 %v1484, %v1666
      %v1707 = vmul.f32 %v1486, %v1666
      %v1708 = vmul.f32 %v1489, %v1666
      %v1709 = vmul.f32 %v1491, %v1666
      %v1710 = vmul.f32 %v1494, %v1666
      %v1711 = vmul.f32 %v1496, %v1666
      %v1712 = vmul.f32 %v1499, %v1666
      %v1713 = vmul.f32 %v1501, %v1666
      %v1714 = vmul.f32 %v1504, %v1666
      %v1715 = vmul.f32 %v1506, %v1666
      %v1716 = vmul.f32 %v1509, %v1666
      %v1717 = vmul.f32 %v1511, %v1666
      %v1718 = vmul.f32 %v1514, %v1666
      %v1719 = vmul.f32 %v1516, %v1666
      %v1720 = vmul.f32 %v1519, %v1666
      %v1721 = vmul.f32 %v1521, %v1666
      %v1722 = vmul.f32 %v1524, %v1666
      %v1723 = vmul.f32 %v1526, %v1666
      %v1724 = vmul.f32 %v1529, %v1666
      %v1725 = vmul.f32 %v1531, %v1666
      %v1726 = vmul.f32 %v1534, %v1666
      %v1727 = vmul.f32 %v1536, %v1666
      %v1728 = vmul.f32 %v1539, %v1666
      %v1729 = vmul.f32 %v1541, %v1666
      %v1730 = vmul.f32 %v1544, %v1666
      %v1731 = vmul.f32 %v1546, %v1666
      %v1732 = vmul.f32 %v1549, %v1666
      %v1733 = vmul.f32 %v1551, %v1666
      %v1734 = vmul.f32 %v1554, %v1666
      %v1735 = vmul.f32 %v1556, %v1666
      %v1736 = vmul.f32 %v1559, %v1666
      %v1737 = vmul.f32 %v1561, %v1666
      %v1738 = vmul.f32 %v1564, %v1666
      %v1739 = vmul.f32 %v1566, %v1666
      %v1740 = vmul.f32 %v1569, %v1666
      %v1741 = vmul.f32 %v1571, %v1666
      %v1742 = vmul.f32 %v1574, %v1666
      %v1743 = vmul.f32 %v1576, %v1666
      %v1744 = vmul.f32 %v1579, %v1666
      %v1745 = vmul.f32 %v1581, %v1666
      %v1746 = vmul.f32 %v1584, %v1666
      %v1747 = vmul.f32 %v1586, %v1666
      %v1748 = vmul.f32 %v1589, %v1666
      %v1749 = vmul.f32 %v1591, %v1666
      %v1750 = vmul.f32 %v1594, %v1666
      %v1751 = vmul.f32 %v1596, %v1666
      %v1752 = vmul.f32 %v1599, %v1666
      %v1753 = vmul.f32 %v1601, %v1666
      %v1754 = vmul.f32 %v1604, %v1666
      %v1755 = vmul.f32 %v1606, %v1666
      %v1756 = vmul.f32 %v1609, %v1666
      %v1757 = vmul.f32 %v1611, %v1666
      %v1758 = vmul.f32 %v1614, %v1666
      %v1759 = vmul.f32 %v1616, %v1666
      %v1760 = vmul.f32 %v1619, %v1666
      %v1761 = vmul.f32 %v1621, %v1666
      %v1762 = vmul.f32 %v1624, %v1666
      %v1763 = vmul.f32 %v1626, %v1666
      %v1764 = vmul.f32 %v1629, %v1666
      %v1765 = vmul.f32 %v1631, %v1666
      %v1766 = vmul.f32 %v1634, %v1666
      %v1767 = vmul.f32 %v1636, %v1666
      %v1768 = vmul.f32 %v1639, %v1666
      %v1769 = vmul.f32 %v1641, %v1666
      %v1770 = vmul.f32 %v1644, %v1666
      %v1771 = vmul.f32 %v1646, %v1666
      %v1772 = vmul.f32 %v1649, %v1666
      %v1773 = vmul.f32 %v1651, %v1666
      %v1774 = vmul.f32 %v1654, %v1666
      %v1775 = vmul.f32 %v1656, %v1666
      %v1776 = vld [vmem:[%s3] sm:$0x1]
      %v1778 = vperm.slane %v1776, 0
      %v1780 = vadd.f32 %v1668, %v1778
      %v1781 = vadd.f32 %v1669, %v1778
      %v1782 = vadd.f32 %v1670, %v1778
      %v1783 = vadd.f32 %v1671, %v1778
      %v1784 = vadd.f32 %v1672, %v1778
      %v1785 = vadd.f32 %v1673, %v1778
      %v1786 = vadd.f32 %v1674, %v1778
      %v1787 = vadd.f32 %v1675, %v1778
      %v1788 = vadd.f32 %v1676, %v1778
      %v1789 = vadd.f32 %v1677, %v1778
      %v1790 = vadd.f32 %v1678, %v1778
      %v1791 = vadd.f32 %v1679, %v1778
      %v1792 = vadd.f32 %v1680, %v1778
      %v1793 = vadd.f32 %v1681, %v1778
      %v1794 = vadd.f32 %v1682, %v1778
      %v1795 = vadd.f32 %v1683, %v1778
      %v1796 = vadd.f32 %v1684, %v1778
      %v1797 = vadd.f32 %v1685, %v1778
      %v1798 = vadd.f32 %v1686, %v1778
      %v1799 = vadd.f32 %v1687, %v1778
      %v1800 = vadd.f32 %v1688, %v1778
      %v1801 = vadd.f32 %v1689, %v1778
      %v1802 = vadd.f32 %v1690, %v1778
      %v1803 = vadd.f32 %v1691, %v1778
      %v1804 = vadd.f32 %v1692, %v1778
      %v1805 = vadd.f32 %v1693, %v1778
      %v1806 = vadd.f32 %v1694, %v1778
      %v1807 = vadd.f32 %v1695, %v1778
      %v1808 = vadd.f32 %v1696, %v1778
      %v1809 = vadd.f32 %v1697, %v1778
      %v1810 = vadd.f32 %v1698, %v1778
      %v1811 = vadd.f32 %v1699, %v1778
      %v1812 = vadd.f32 %v1700, %v1778
      %v1813 = vadd.f32 %v1701, %v1778
      %v1814 = vadd.f32 %v1702, %v1778
      %v1815 = vadd.f32 %v1703, %v1778
      %v1816 = vadd.f32 %v1704, %v1778
      %v1817 = vadd.f32 %v1705, %v1778
      %v1818 = vadd.f32 %v1706, %v1778
      %v1819 = vadd.f32 %v1707, %v1778
      %v1820 = vadd.f32 %v1708, %v1778
      %v1821 = vadd.f32 %v1709, %v1778
      %v1822 = vadd.f32 %v1710, %v1778
      %v1823 = vadd.f32 %v1711, %v1778
      %v1824 = vadd.f32 %v1712, %v1778
      %v1825 = vadd.f32 %v1713, %v1778
      %v1826 = vadd.f32 %v1714, %v1778
      %v1827 = vadd.f32 %v1715, %v1778
      %v1828 = vadd.f32 %v1716, %v1778
      %v1829 = vadd.f32 %v1717, %v1778
      %v1830 = vadd.f32 %v1718, %v1778
      %v1831 = vadd.f32 %v1719, %v1778
      %v1832 = vadd.f32 %v1720, %v1778
      %v1833 = vadd.f32 %v1721, %v1778
      %v1834 = vadd.f32 %v1722, %v1778
      %v1835 = vadd.f32 %v1723, %v1778
      %v1836 = vadd.f32 %v1724, %v1778
      %v1837 = vadd.f32 %v1725, %v1778
      %v1838 = vadd.f32 %v1726, %v1778
      %v1839 = vadd.f32 %v1727, %v1778
      %v1840 = vadd.f32 %v1728, %v1778
      %v1841 = vadd.f32 %v1729, %v1778
      %v1842 = vadd.f32 %v1730, %v1778
      %v1843 = vadd.f32 %v1731, %v1778
      %v1844 = vadd.f32 %v1732, %v1778
      %v1845 = vadd.f32 %v1733, %v1778
      %v1846 = vadd.f32 %v1734, %v1778
      %v1847 = vadd.f32 %v1735, %v1778
      %v1848 = vadd.f32 %v1736, %v1778
      %v1849 = vadd.f32 %v1737, %v1778
      %v1850 = vadd.f32 %v1738, %v1778
      %v1851 = vadd.f32 %v1739, %v1778
      %v1852 = vadd.f32 %v1740, %v1778
      %v1853 = vadd.f32 %v1741, %v1778
      %v1854 = vadd.f32 %v1742, %v1778
      %v1855 = vadd.f32 %v1743, %v1778
      %v1856 = vadd.f32 %v1744, %v1778
      %v1857 = vadd.f32 %v1745, %v1778
      %v1858 = vadd.f32 %v1746, %v1778
      %v1859 = vadd.f32 %v1747, %v1778
      %v1860 = vadd.f32 %v1748, %v1778
      %v1861 = vadd.f32 %v1749, %v1778
      %v1862 = vadd.f32 %v1750, %v1778
      %v1863 = vadd.f32 %v1751, %v1778
      %v1864 = vadd.f32 %v1752, %v1778
      %v1865 = vadd.f32 %v1753, %v1778
      %v1866 = vadd.f32 %v1754, %v1778
      %v1867 = vadd.f32 %v1755, %v1778
      %v1868 = vadd.f32 %v1756, %v1778
      %v1869 = vadd.f32 %v1757, %v1778
      %v1870 = vadd.f32 %v1758, %v1778
      %v1871 = vadd.f32 %v1759, %v1778
      %v1872 = vadd.f32 %v1760, %v1778
      %v1873 = vadd.f32 %v1761, %v1778
      %v1874 = vadd.f32 %v1762, %v1778
      %v1875 = vadd.f32 %v1763, %v1778
      %v1876 = vadd.f32 %v1764, %v1778
      %v1877 = vadd.f32 %v1765, %v1778
      %v1878 = vadd.f32 %v1766, %v1778
      %v1879 = vadd.f32 %v1767, %v1778
      %v1880 = vadd.f32 %v1768, %v1778
      %v1881 = vadd.f32 %v1769, %v1778
      %v1882 = vadd.f32 %v1770, %v1778
      %v1883 = vadd.f32 %v1771, %v1778
      %v1884 = vadd.f32 %v1772, %v1778
      %v1885 = vadd.f32 %v1773, %v1778
      %v1886 = vadd.f32 %v1774, %v1778
      %v1887 = vadd.f32 %v1775, %v1778
      %v1888 = vmax.f32 %v1780, 0.0
      %v1889 = vmax.f32 %v1781, 0.0
      %v1890 = vmax.f32 %v1782, 0.0
      %v1891 = vmax.f32 %v1783, 0.0
      %v1892 = vmax.f32 %v1784, 0.0
      %v1893 = vmax.f32 %v1785, 0.0
      %v1894 = vmax.f32 %v1786, 0.0
      %v1895 = vmax.f32 %v1787, 0.0
      %v1896 = vmax.f32 %v1788, 0.0
      %v1897 = vmax.f32 %v1789, 0.0
      %v1898 = vmax.f32 %v1790, 0.0
      %v1899 = vmax.f32 %v1791, 0.0
      %v1900 = vmax.f32 %v1792, 0.0
      %v1901 = vmax.f32 %v1793, 0.0
      %v1902 = vmax.f32 %v1794, 0.0
      %v1903 = vmax.f32 %v1795, 0.0
      %v1904 = vmax.f32 %v1796, 0.0
      %v1905 = vmax.f32 %v1797, 0.0
      %v1906 = vmax.f32 %v1798, 0.0
      %v1907 = vmax.f32 %v1799, 0.0
      %v1908 = vmax.f32 %v1800, 0.0
      %v1909 = vmax.f32 %v1801, 0.0
      %v1910 = vmax.f32 %v1802, 0.0
      %v1911 = vmax.f32 %v1803, 0.0
      %v1912 = vmax.f32 %v1804, 0.0
      %v1913 = vmax.f32 %v1805, 0.0
      %v1914 = vmax.f32 %v1806, 0.0
      %v1915 = vmax.f32 %v1807, 0.0
      %v1916 = vmax.f32 %v1808, 0.0
      %v1917 = vmax.f32 %v1809, 0.0
      %v1918 = vmax.f32 %v1810, 0.0
      %v1919 = vmax.f32 %v1811, 0.0
      %v1920 = vmax.f32 %v1812, 0.0
      %v1921 = vmax.f32 %v1813, 0.0
      %v1922 = vmax.f32 %v1814, 0.0
      %v1923 = vmax.f32 %v1815, 0.0
      %v1924 = vmax.f32 %v1816, 0.0
      %v1925 = vmax.f32 %v1817, 0.0
      %v1926 = vmax.f32 %v1818, 0.0
      %v1927 = vmax.f32 %v1819, 0.0
      %v1928 = vmax.f32 %v1820, 0.0
      %v1929 = vmax.f32 %v1821, 0.0
      %v1930 = vmax.f32 %v1822, 0.0
      %v1931 = vmax.f32 %v1823, 0.0
      %v1932 = vmax.f32 %v1824, 0.0
      %v1933 = vmax.f32 %v1825, 0.0
      %v1934 = vmax.f32 %v1826, 0.0
      %v1935 = vmax.f32 %v1827, 0.0
      %v1936 = vmax.f32 %v1828, 0.0
      %v1937 = vmax.f32 %v1829, 0.0
      %v1938 = vmax.f32 %v1830, 0.0
      %v1939 = vmax.f32 %v1831, 0.0
      %v1940 = vmax.f32 %v1832, 0.0
      %v1941 = vmax.f32 %v1833, 0.0
      %v1942 = vmax.f32 %v1834, 0.0
      %v1943 = vmax.f32 %v1835, 0.0
      %v1944 = vmax.f32 %v1836, 0.0
      %v1945 = vmax.f32 %v1837, 0.0
      %v1946 = vmax.f32 %v1838, 0.0
      %v1947 = vmax.f32 %v1839, 0.0
      %v1948 = vmax.f32 %v1840, 0.0
      %v1949 = vmax.f32 %v1841, 0.0
      %v1950 = vmax.f32 %v1842, 0.0
      %v1951 = vmax.f32 %v1843, 0.0
      %v1952 = vmax.f32 %v1844, 0.0
      %v1953 = vmax.f32 %v1845, 0.0
      %v1954 = vmax.f32 %v1846, 0.0
      %v1955 = vmax.f32 %v1847, 0.0
      %v1956 = vmax.f32 %v1848, 0.0
      %v1957 = vmax.f32 %v1849, 0.0
      %v1958 = vmax.f32 %v1850, 0.0
      %v1959 = vmax.f32 %v1851, 0.0
      %v1960 = vmax.f32 %v1852, 0.0
      %v1961 = vmax.f32 %v1853, 0.0
      %v1962 = vmax.f32 %v1854, 0.0
      %v1963 = vmax.f32 %v1855, 0.0
      %v1964 = vmax.f32 %v1856, 0.0
      %v1965 = vmax.f32 %v1857, 0.0
      %v1966 = vmax.f32 %v1858, 0.0
      %v1967 = vmax.f32 %v1859, 0.0
      %v1968 = vmax.f32 %v1860, 0.0
      %v1969 = vmax.f32 %v1861, 0.0
      %v1970 = vmax.f32 %v1862, 0.0
      %v1971 = vmax.f32 %v1863, 0.0
      %v1972 = vmax.f32 %v1864, 0.0
      %v1973 = vmax.f32 %v1865, 0.0
      %v1974 = vmax.f32 %v1866, 0.0
      %v1975 = vmax.f32 %v1867, 0.0
      %v1976 = vmax.f32 %v1868, 0.0
      %v1977 = vmax.f32 %v1869, 0.0
      %v1978 = vmax.f32 %v1870, 0.0
      %v1979 = vmax.f32 %v1871, 0.0
      %v1980 = vmax.f32 %v1872, 0.0
      %v1981 = vmax.f32 %v1873, 0.0
      %v1982 = vmax.f32 %v1874, 0.0
      %v1983 = vmax.f32 %v1875, 0.0
      %v1984 = vmax.f32 %v1876, 0.0
      %v1985 = vmax.f32 %v1877, 0.0
      %v1986 = vmax.f32 %v1878, 0.0
      %v1987 = vmax.f32 %v1879, 0.0
      %v1988 = vmax.f32 %v1880, 0.0
      %v1989 = vmax.f32 %v1881, 0.0
      %v1990 = vmax.f32 %v1882, 0.0
      %v1991 = vmax.f32 %v1883, 0.0
      %v1992 = vmax.f32 %v1884, 0.0
      %v1993 = vmax.f32 %v1885, 0.0
      %v1994 = vmax.f32 %v1886, 0.0
      %v1995 = vmax.f32 %v1887, 0.0
      %v1996 = vld [vmem:[%s4] sm:$0xff]
      %v1997 = vld [vmem:[%s4 + $0x8] sm:$0xff]
      %v1998 = vld [vmem:[%s4 + $0x10] sm:$0xff]
      %v1999 = vld [vmem:[%s4 + $0x18] sm:$0xff]
      %v2000 = vld [vmem:[%s4 + $0x20] sm:$0xff]
      %v2001 = vld [vmem:[%s4 + $0x28] sm:$0xff]
      %v2002 = vld [vmem:[%s4 + $0x30] sm:$0xff]
      %v2003 = vld [vmem:[%s4 + $0x38] sm:$0xff]
      %v2004 = vld [vmem:[%s4 + $0x40] sm:$0xff]
      %v2005 = vld [vmem:[%s4 + $0x48] sm:$0xff]
      %v2006 = vld [vmem:[%s4 + $0x50] sm:$0xff]
      %v2007 = vld [vmem:[%s4 + $0x58] sm:$0xff]
      %v2008 = vld [vmem:[%s4 + $0x60] sm:$0xff]
      %v2009 = vld [vmem:[%s4 + $0x68] sm:$0xff]
      %v2010 = vld [vmem:[%s4 + $0x70] sm:$0xff]
      %v2011 = vld [vmem:[%s4 + $0x78] sm:$0xff]
      %v2012 = vld [vmem:[%s4 + $0x80] sm:$0xff]
      %v2013 = vld [vmem:[%s4 + $0x88] sm:$0xff]
      %v2014 = vld [vmem:[%s4 + $0x90] sm:$0xff]
      %v2015 = vld [vmem:[%s4 + $0x98] sm:$0xff]
      %v2016 = vld [vmem:[%s4 + $0xa0] sm:$0xff]
      %v2017 = vld [vmem:[%s4 + $0xa8] sm:$0xff]
      %v2018 = vld [vmem:[%s4 + $0xb0] sm:$0xff]
      %v2019 = vld [vmem:[%s4 + $0xb8] sm:$0xff]
      %v2020 = vld [vmem:[%s4 + $0xc0] sm:$0xff]
      %v2021 = vld [vmem:[%s4 + $0xc8] sm:$0xff]
      %v2022 = vld [vmem:[%s4 + $0xd0] sm:$0xff]
      %v2023 = vld [vmem:[%s4 + $0xd8] sm:$0xff]
      %v2024 = vld [vmem:[%s4 + $0xe0] sm:$0xff]
      %v2025 = vld [vmem:[%s4 + $0xe8] sm:$0xff]
      %v2026 = vld [vmem:[%s4 + $0xf0] sm:$0xff]
      %v2027 = vld [vmem:[%s4 + $0xf8] sm:$0xff]
      %v2028 = vld [vmem:[%s4 + $0x100] sm:$0xff]
      %v2029 = vld [vmem:[%s4 + $0x108] sm:$0xff]
      %v2030 = vld [vmem:[%s4 + $0x110] sm:$0xff]
      %v2031 = vld [vmem:[%s4 + $0x118] sm:$0xff]
      %v2032 = vld [vmem:[%s4 + $0x120] sm:$0xff]
      %v2033 = vld [vmem:[%s4 + $0x128] sm:$0xff]
      %v2034 = vld [vmem:[%s4 + $0x130] sm:$0xff]
      %v2035 = vld [vmem:[%s4 + $0x138] sm:$0xff]
      %v2036 = vld [vmem:[%s4 + $0x140] sm:$0xff]
      %v2037 = vld [vmem:[%s4 + $0x148] sm:$0xff]
      %v2038 = vld [vmem:[%s4 + $0x150] sm:$0xff]
      %v2039 = vld [vmem:[%s4 + $0x158] sm:$0xff]
      %v2040 = vld [vmem:[%s4 + $0x160] sm:$0xff]
      %v2041 = vld [vmem:[%s4 + $0x168] sm:$0xff]
      %v2042 = vld [vmem:[%s4 + $0x170] sm:$0xff]
      %v2043 = vld [vmem:[%s4 + $0x178] sm:$0xff]
      %v2044 = vld [vmem:[%s4 + $0x180] sm:$0xff]
      %v2045 = vld [vmem:[%s4 + $0x188] sm:$0xff]
      %v2046 = vld [vmem:[%s4 + $0x190] sm:$0xff]
      %v2047 = vld [vmem:[%s4 + $0x198] sm:$0xff]
      %v2048 = vld [vmem:[%s4 + $0x1a0] sm:$0xff]
      %v2049 = vld [vmem:[%s4 + $0x1a8] sm:$0xff]
      %v2050 = vld [vmem:[%s4 + $0x1b0] sm:$0xff]
      %v2051 = vld [vmem:[%s4 + $0x1b8] sm:$0xff]
      %v2052 = vld [vmem:[%s4 + $0x1c0] sm:$0xff]
      %v2053 = vld [vmem:[%s4 + $0x1c8] sm:$0xff]
      %v2054 = vld [vmem:[%s4 + $0x1d0] sm:$0xff]
      %v2055 = vld [vmem:[%s4 + $0x1d8] sm:$0xff]
      %v2056 = vld [vmem:[%s4 + $0x1e0] sm:$0xff]
      %v2057 = vld [vmem:[%s4 + $0x1e8] sm:$0xff]
      %v2058 = vld [vmem:[%s4 + $0x1f0] sm:$0xff]
      %v2059 = vld [vmem:[%s4 + $0x1f8] sm:$0xff]
      %v2060 = vld [vmem:[%s4 + $0x200] sm:$0xff]
      %v2061 = vld [vmem:[%s4 + $0x208] sm:$0xff]
      %v2062 = vld [vmem:[%s4 + $0x210] sm:$0xff]
      %v2063 = vld [vmem:[%s4 + $0x218] sm:$0xff]
      %v2064 = vld [vmem:[%s4 + $0x220] sm:$0xff]
      %v2065 = vld [vmem:[%s4 + $0x228] sm:$0xff]
      %v2066 = vld [vmem:[%s4 + $0x230] sm:$0xff]
      %v2067 = vld [vmem:[%s4 + $0x238] sm:$0xff]
      %v2068 = vld [vmem:[%s4 + $0x240] sm:$0xff]
      %v2069 = vld [vmem:[%s4 + $0x248] sm:$0xff]
      %v2070 = vld [vmem:[%s4 + $0x250] sm:$0xff]
      %v2071 = vld [vmem:[%s4 + $0x258] sm:$0xff]
      %v2072 = vld [vmem:[%s4 + $0x260] sm:$0xff]
      %v2073 = vld [vmem:[%s4 + $0x268] sm:$0xff]
      %v2074 = vld [vmem:[%s4 + $0x270] sm:$0xff]
      %v2075 = vld [vmem:[%s4 + $0x278] sm:$0xff]
      %v2076 = vld [vmem:[%s4 + $0x280] sm:$0xff]
      %v2077 = vld [vmem:[%s4 + $0x288] sm:$0xff]
      %v2078 = vld [vmem:[%s4 + $0x290] sm:$0xff]
      %v2079 = vld [vmem:[%s4 + $0x298] sm:$0xff]
      %v2080 = vld [vmem:[%s4 + $0x2a0] sm:$0xff]
      %v2081 = vld [vmem:[%s4 + $0x2a8] sm:$0xff]
      %v2082 = vld [vmem:[%s4 + $0x2b0] sm:$0xff]
      %v2083 = vld [vmem:[%s4 + $0x2b8] sm:$0xff]
      %v2084 = vld [vmem:[%s4 + $0x2c0] sm:$0xff]
      %v2085 = vld [vmem:[%s4 + $0x2c8] sm:$0xff]
      %v2086 = vld [vmem:[%s4 + $0x2d0] sm:$0xff]
      %v2087 = vld [vmem:[%s4 + $0x2d8] sm:$0xff]
      %v2088 = vld [vmem:[%s4 + $0x2e0] sm:$0xff]
      %v2089 = vld [vmem:[%s4 + $0x2e8] sm:$0xff]
      %v2090 = vld [vmem:[%s4 + $0x2f0] sm:$0xff]
      %v2091 = vld [vmem:[%s4 + $0x2f8] sm:$0xff]
      %v2092 = vld [vmem:[%s4 + $0x300] sm:$0xff]
      %v2093 = vld [vmem:[%s4 + $0x308] sm:$0xff]
      %v2094 = vld [vmem:[%s4 + $0x310] sm:$0xff]
      %v2095 = vld [vmem:[%s4 + $0x318] sm:$0xff]
      %v2096 = vld [vmem:[%s4 + $0x320] sm:$0xff]
      %v2097 = vld [vmem:[%s4 + $0x328] sm:$0xff]
      %v2098 = vld [vmem:[%s4 + $0x330] sm:$0xff]
      %v2099 = vld [vmem:[%s4 + $0x338] sm:$0xff]
      %v2100 = vld [vmem:[%s4 + $0x340] sm:$0xff]
      %v2101 = vld [vmem:[%s4 + $0x348] sm:$0xff]
      %v2102 = vld [vmem:[%s4 + $0x350] sm:$0xff]
      %v2103 = vld [vmem:[%s4 + $0x358] sm:$0xff]
      %2105 = vset.pattern.permute.xlu0 0
      %2106 = vperm.xlu0 %2105, %v1996
      %v2107 = vpop.permute.xlu0 %2106
      %2110 = vset.pattern.permute.xlu0 0
      %2111 = vperm.xlu0 %2110, %v1997
      %v2112 = vpop.permute.xlu0 %2111
      %2115 = vset.pattern.permute.xlu0 0
      %2116 = vperm.xlu0 %2115, %v1998
      %v2117 = vpop.permute.xlu0 %2116
      %2120 = vset.pattern.permute.xlu0 0
      %2121 = vperm.xlu0 %2120, %v1999
      %v2122 = vpop.permute.xlu0 %2121
      %2125 = vset.pattern.permute.xlu0 0
      %2126 = vperm.xlu0 %2125, %v2000
      %v2127 = vpop.permute.xlu0 %2126
      %2130 = vset.pattern.permute.xlu0 0
      %2131 = vperm.xlu0 %2130, %v2001
      %v2132 = vpop.permute.xlu0 %2131
      %2135 = vset.pattern.permute.xlu0 0
      %2136 = vperm.xlu0 %2135, %v2002
      %v2137 = vpop.permute.xlu0 %2136
      %2140 = vset.pattern.permute.xlu0 0
      %2141 = vperm.xlu0 %2140, %v2003
      %v2142 = vpop.permute.xlu0 %2141
      %2145 = vset.pattern.permute.xlu0 0
      %2146 = vperm.xlu0 %2145, %v2004
      %v2147 = vpop.permute.xlu0 %2146
      %2150 = vset.pattern.permute.xlu0 0
      %2151 = vperm.xlu0 %2150, %v2005
      %v2152 = vpop.permute.xlu0 %2151
      %2155 = vset.pattern.permute.xlu0 0
      %2156 = vperm.xlu0 %2155, %v2006
      %v2157 = vpop.permute.xlu0 %2156
      %2160 = vset.pattern.permute.xlu0 0
      %2161 = vperm.xlu0 %2160, %v2007
      %v2162 = vpop.permute.xlu0 %2161
      %2165 = vset.pattern.permute.xlu0 0
      %2166 = vperm.xlu0 %2165, %v2008
      %v2167 = vpop.permute.xlu0 %2166
      %2170 = vset.pattern.permute.xlu0 0
      %2171 = vperm.xlu0 %2170, %v2009
      %v2172 = vpop.permute.xlu0 %2171
      %2175 = vset.pattern.permute.xlu0 0
      %2176 = vperm.xlu0 %2175, %v2010
      %v2177 = vpop.permute.xlu0 %2176
      %2180 = vset.pattern.permute.xlu0 0
      %2181 = vperm.xlu0 %2180, %v2011
      %v2182 = vpop.permute.xlu0 %2181
      %2185 = vset.pattern.permute.xlu0 0
      %2186 = vperm.xlu0 %2185, %v2012
      %v2187 = vpop.permute.xlu0 %2186
      %2190 = vset.pattern.permute.xlu0 0
      %2191 = vperm.xlu0 %2190, %v2013
      %v2192 = vpop.permute.xlu0 %2191
      %2195 = vset.pattern.permute.xlu0 0
      %2196 = vperm.xlu0 %2195, %v2014
      %v2197 = vpop.permute.xlu0 %2196
      %2200 = vset.pattern.permute.xlu0 0
      %2201 = vperm.xlu0 %2200, %v2015
      %v2202 = vpop.permute.xlu0 %2201
      %2205 = vset.pattern.permute.xlu0 0
      %2206 = vperm.xlu0 %2205, %v2016
      %v2207 = vpop.permute.xlu0 %2206
      %2210 = vset.pattern.permute.xlu0 0
      %2211 = vperm.xlu0 %2210, %v2017
      %v2212 = vpop.permute.xlu0 %2211
      %2215 = vset.pattern.permute.xlu0 0
      %2216 = vperm.xlu0 %2215, %v2018
      %v2217 = vpop.permute.xlu0 %2216
      %2220 = vset.pattern.permute.xlu0 0
      %2221 = vperm.xlu0 %2220, %v2019
      %v2222 = vpop.permute.xlu0 %2221
      %2225 = vset.pattern.permute.xlu0 0
      %2226 = vperm.xlu0 %2225, %v2020
      %v2227 = vpop.permute.xlu0 %2226
      %2230 = vset.pattern.permute.xlu0 0
      %2231 = vperm.xlu0 %2230, %v2021
      %v2232 = vpop.permute.xlu0 %2231
      %2235 = vset.pattern.permute.xlu0 0
      %2236 = vperm.xlu0 %2235, %v2022
      %v2237 = vpop.permute.xlu0 %2236
      %2240 = vset.pattern.permute.xlu0 0
      %2241 = vperm.xlu0 %2240, %v2023
      %v2242 = vpop.permute.xlu0 %2241
      %2245 = vset.pattern.permute.xlu0 0
      %2246 = vperm.xlu0 %2245, %v2024
      %v2247 = vpop.permute.xlu0 %2246
      %2250 = vset.pattern.permute.xlu0 0
      %2251 = vperm.xlu0 %2250, %v2025
      %v2252 = vpop.permute.xlu0 %2251
      %2255 = vset.pattern.permute.xlu0 0
      %2256 = vperm.xlu0 %2255, %v2026
      %v2257 = vpop.permute.xlu0 %2256
      %2260 = vset.pattern.permute.xlu0 0
      %2261 = vperm.xlu0 %2260, %v2027
      %v2262 = vpop.permute.xlu0 %2261
      %2265 = vset.pattern.permute.xlu0 0
      %2266 = vperm.xlu0 %2265, %v2028
      %v2267 = vpop.permute.xlu0 %2266
      %2270 = vset.pattern.permute.xlu0 0
      %2271 = vperm.xlu0 %2270, %v2029
      %v2272 = vpop.permute.xlu0 %2271
      %2275 = vset.pattern.permute.xlu0 0
      %2276 = vperm.xlu0 %2275, %v2030
      %v2277 = vpop.permute.xlu0 %2276
      %2280 = vset.pattern.permute.xlu0 0
      %2281 = vperm.xlu0 %2280, %v2031
      %v2282 = vpop.permute.xlu0 %2281
      %2285 = vset.pattern.permute.xlu0 0
      %2286 = vperm.xlu0 %2285, %v2032
      %v2287 = vpop.permute.xlu0 %2286
      %2290 = vset.pattern.permute.xlu0 0
      %2291 = vperm.xlu0 %2290, %v2033
      %v2292 = vpop.permute.xlu0 %2291
      %2295 = vset.pattern.permute.xlu0 0
      %2296 = vperm.xlu0 %2295, %v2034
      %v2297 = vpop.permute.xlu0 %2296
      %2300 = vset.pattern.permute.xlu0 0
      %2301 = vperm.xlu0 %2300, %v2035
      %v2302 = vpop.permute.xlu0 %2301
      %2305 = vset.pattern.permute.xlu0 0
      %2306 = vperm.xlu0 %2305, %v2036
      %v2307 = vpop.permute.xlu0 %2306
      %2310 = vset.pattern.permute.xlu0 0
      %2311 = vperm.xlu0 %2310, %v2037
      %v2312 = vpop.permute.xlu0 %2311
      %2315 = vset.pattern.permute.xlu0 0
      %2316 = vperm.xlu0 %2315, %v2038
      %v2317 = vpop.permute.xlu0 %2316
      %2320 = vset.pattern.permute.xlu0 0
      %2321 = vperm.xlu0 %2320, %v2039
      %v2322 = vpop.permute.xlu0 %2321
      %2325 = vset.pattern.permute.xlu0 0
      %2326 = vperm.xlu0 %2325, %v2040
      %v2327 = vpop.permute.xlu0 %2326
      %2330 = vset.pattern.permute.xlu0 0
      %2331 = vperm.xlu0 %2330, %v2041
      %v2332 = vpop.permute.xlu0 %2331
      %2335 = vset.pattern.permute.xlu0 0
      %2336 = vperm.xlu0 %2335, %v2042
      %v2337 = vpop.permute.xlu0 %2336
      %2340 = vset.pattern.permute.xlu0 0
      %2341 = vperm.xlu0 %2340, %v2043
      %v2342 = vpop.permute.xlu0 %2341
      %2345 = vset.pattern.permute.xlu0 0
      %2346 = vperm.xlu0 %2345, %v2044
      %v2347 = vpop.permute.xlu0 %2346
      %2350 = vset.pattern.permute.xlu0 0
      %2351 = vperm.xlu0 %2350, %v2045
      %v2352 = vpop.permute.xlu0 %2351
      %2355 = vset.pattern.permute.xlu0 0
      %2356 = vperm.xlu0 %2355, %v2046
      %v2357 = vpop.permute.xlu0 %2356
      %2360 = vset.pattern.permute.xlu0 0
      %2361 = vperm.xlu0 %2360, %v2047
      %v2362 = vpop.permute.xlu0 %2361
      %2365 = vset.pattern.permute.xlu0 0
      %2366 = vperm.xlu0 %2365, %v2048
      %v2367 = vpop.permute.xlu0 %2366
      %2370 = vset.pattern.permute.xlu0 0
      %2371 = vperm.xlu0 %2370, %v2049
      %v2372 = vpop.permute.xlu0 %2371
      %2375 = vset.pattern.permute.xlu0 0
      %2376 = vperm.xlu0 %2375, %v2050
      %v2377 = vpop.permute.xlu0 %2376
      %2380 = vset.pattern.permute.xlu0 0
      %2381 = vperm.xlu0 %2380, %v2051
      %v2382 = vpop.permute.xlu0 %2381
      %2385 = vset.pattern.permute.xlu0 0
      %2386 = vperm.xlu0 %2385, %v2052
      %v2387 = vpop.permute.xlu0 %2386
      %2390 = vset.pattern.permute.xlu0 0
      %2391 = vperm.xlu0 %2390, %v2053
      %v2392 = vpop.permute.xlu0 %2391
      %2395 = vset.pattern.permute.xlu0 0
      %2396 = vperm.xlu0 %2395, %v2054
      %v2397 = vpop.permute.xlu0 %2396
      %2400 = vset.pattern.permute.xlu0 0
      %2401 = vperm.xlu0 %2400, %v2055
      %v2402 = vpop.permute.xlu0 %2401
      %2405 = vset.pattern.permute.xlu0 0
      %2406 = vperm.xlu0 %2405, %v2056
      %v2407 = vpop.permute.xlu0 %2406
      %2410 = vset.pattern.permute.xlu0 0
      %2411 = vperm.xlu0 %2410, %v2057
      %v2412 = vpop.permute.xlu0 %2411
      %2415 = vset.pattern.permute.xlu0 0
      %2416 = vperm.xlu0 %2415, %v2058
      %v2417 = vpop.permute.xlu0 %2416
      %2420 = vset.pattern.permute.xlu0 0
      %2421 = vperm.xlu0 %2420, %v2059
      %v2422 = vpop.permute.xlu0 %2421
      %2425 = vset.pattern.permute.xlu0 0
      %2426 = vperm.xlu0 %2425, %v2060
      %v2427 = vpop.permute.xlu0 %2426
      %2430 = vset.pattern.permute.xlu0 0
      %2431 = vperm.xlu0 %2430, %v2061
      %v2432 = vpop.permute.xlu0 %2431
      %2435 = vset.pattern.permute.xlu0 0
      %2436 = vperm.xlu0 %2435, %v2062
      %v2437 = vpop.permute.xlu0 %2436
      %2440 = vset.pattern.permute.xlu0 0
      %2441 = vperm.xlu0 %2440, %v2063
      %v2442 = vpop.permute.xlu0 %2441
      %2445 = vset.pattern.permute.xlu0 0
      %2446 = vperm.xlu0 %2445, %v2064
      %v2447 = vpop.permute.xlu0 %2446
      %2450 = vset.pattern.permute.xlu0 0
      %2451 = vperm.xlu0 %2450, %v2065
      %v2452 = vpop.permute.xlu0 %2451
      %2455 = vset.pattern.permute.xlu0 0
      %2456 = vperm.xlu0 %2455, %v2066
      %v2457 = vpop.permute.xlu0 %2456
      %2460 = vset.pattern.permute.xlu0 0
      %2461 = vperm.xlu0 %2460, %v2067
      %v2462 = vpop.permute.xlu0 %2461
      %2465 = vset.pattern.permute.xlu0 0
      %2466 = vperm.xlu0 %2465, %v2068
      %v2467 = vpop.permute.xlu0 %2466
      %2470 = vset.pattern.permute.xlu0 0
      %2471 = vperm.xlu0 %2470, %v2069
      %v2472 = vpop.permute.xlu0 %2471
      %2475 = vset.pattern.permute.xlu0 0
      %2476 = vperm.xlu0 %2475, %v2070
      %v2477 = vpop.permute.xlu0 %2476
      %2480 = vset.pattern.permute.xlu0 0
      %2481 = vperm.xlu0 %2480, %v2071
      %v2482 = vpop.permute.xlu0 %2481
      %2485 = vset.pattern.permute.xlu0 0
      %2486 = vperm.xlu0 %2485, %v2072
      %v2487 = vpop.permute.xlu0 %2486
      %2490 = vset.pattern.permute.xlu0 0
      %2491 = vperm.xlu0 %2490, %v2073
      %v2492 = vpop.permute.xlu0 %2491
      %2495 = vset.pattern.permute.xlu0 0
      %2496 = vperm.xlu0 %2495, %v2074
      %v2497 = vpop.permute.xlu0 %2496
      %2500 = vset.pattern.permute.xlu0 0
      %2501 = vperm.xlu0 %2500, %v2075
      %v2502 = vpop.permute.xlu0 %2501
      %2505 = vset.pattern.permute.xlu0 0
      %2506 = vperm.xlu0 %2505, %v2076
      %v2507 = vpop.permute.xlu0 %2506
      %2510 = vset.pattern.permute.xlu0 0
      %2511 = vperm.xlu0 %2510, %v2077
      %v2512 = vpop.permute.xlu0 %2511
      %2515 = vset.pattern.permute.xlu0 0
      %2516 = vperm.xlu0 %2515, %v2078
      %v2517 = vpop.permute.xlu0 %2516
      %2520 = vset.pattern.permute.xlu0 0
      %2521 = vperm.xlu0 %2520, %v2079
      %v2522 = vpop.permute.xlu0 %2521
      %2525 = vset.pattern.permute.xlu0 0
      %2526 = vperm.xlu0 %2525, %v2080
      %v2527 = vpop.permute.xlu0 %2526
      %2530 = vset.pattern.permute.xlu0 0
      %2531 = vperm.xlu0 %2530, %v2081
      %v2532 = vpop.permute.xlu0 %2531
      %2535 = vset.pattern.permute.xlu0 0
      %2536 = vperm.xlu0 %2535, %v2082
      %v2537 = vpop.permute.xlu0 %2536
      %2540 = vset.pattern.permute.xlu0 0
      %2541 = vperm.xlu0 %2540, %v2083
      %v2542 = vpop.permute.xlu0 %2541
      %2545 = vset.pattern.permute.xlu0 0
      %2546 = vperm.xlu0 %2545, %v2084
      %v2547 = vpop.permute.xlu0 %2546
      %2550 = vset.pattern.permute.xlu0 0
      %2551 = vperm.xlu0 %2550, %v2085
      %v2552 = vpop.permute.xlu0 %2551
      %2555 = vset.pattern.permute.xlu0 0
      %2556 = vperm.xlu0 %2555, %v2086
      %v2557 = vpop.permute.xlu0 %2556
      %2560 = vset.pattern.permute.xlu0 0
      %2561 = vperm.xlu0 %2560, %v2087
      %v2562 = vpop.permute.xlu0 %2561
      %2565 = vset.pattern.permute.xlu0 0
      %2566 = vperm.xlu0 %2565, %v2088
      %v2567 = vpop.permute.xlu0 %2566
      %2570 = vset.pattern.permute.xlu0 0
      %2571 = vperm.xlu0 %2570, %v2089
      %v2572 = vpop.permute.xlu0 %2571
      %2575 = vset.pattern.permute.xlu0 0
      %2576 = vperm.xlu0 %2575, %v2090
      %v2577 = vpop.permute.xlu0 %2576
      %2580 = vset.pattern.permute.xlu0 0
      %2581 = vperm.xlu0 %2580, %v2091
      %v2582 = vpop.permute.xlu0 %2581
      %2585 = vset.pattern.permute.xlu0 0
      %2586 = vperm.xlu0 %2585, %v2092
      %v2587 = vpop.permute.xlu0 %2586
      %2590 = vset.pattern.permute.xlu0 0
      %2591 = vperm.xlu0 %2590, %v2093
      %v2592 = vpop.permute.xlu0 %2591
      %2595 = vset.pattern.permute.xlu0 0
      %2596 = vperm.xlu0 %2595, %v2094
      %v2597 = vpop.permute.xlu0 %2596
      %2600 = vset.pattern.permute.xlu0 0
      %2601 = vperm.xlu0 %2600, %v2095
      %v2602 = vpop.permute.xlu0 %2601
      %2605 = vset.pattern.permute.xlu0 0
      %2606 = vperm.xlu0 %2605, %v2096
      %v2607 = vpop.permute.xlu0 %2606
      %2610 = vset.pattern.permute.xlu0 0
      %2611 = vperm.xlu0 %2610, %v2097
      %v2612 = vpop.permute.xlu0 %2611
      %2615 = vset.pattern.permute.xlu0 0
      %2616 = vperm.xlu0 %2615, %v2098
      %v2617 = vpop.permute.xlu0 %2616
      %2620 = vset.pattern.permute.xlu0 0
      %2621 = vperm.xlu0 %2620, %v2099
      %v2622 = vpop.permute.xlu0 %2621
      %2625 = vset.pattern.permute.xlu0 0
      %2626 = vperm.xlu0 %2625, %v2100
      %v2627 = vpop.permute.xlu0 %2626
      %2630 = vset.pattern.permute.xlu0 0
      %2631 = vperm.xlu0 %2630, %v2101
      %v2632 = vpop.permute.xlu0 %2631
      %2635 = vset.pattern.permute.xlu0 0
      %2636 = vperm.xlu0 %2635, %v2102
      %v2637 = vpop.permute.xlu0 %2636
      %2640 = vset.pattern.permute.xlu0 0
      %2641 = vperm.xlu0 %2640, %v2103
      %v2642 = vpop.permute.xlu0 %2641
      %v2644 = vmul.f32 %v1888, %v2107
      %v2645 = vmul.f32 %v1889, %v2112
      %v2646 = vmul.f32 %v1890, %v2117
      %v2647 = vmul.f32 %v1891, %v2122
      %v2648 = vmul.f32 %v1892, %v2127
      %v2649 = vmul.f32 %v1893, %v2132
      %v2650 = vmul.f32 %v1894, %v2137
      %v2651 = vmul.f32 %v1895, %v2142
      %v2652 = vmul.f32 %v1896, %v2147
      %v2653 = vmul.f32 %v1897, %v2152
      %v2654 = vmul.f32 %v1898, %v2157
      %v2655 = vmul.f32 %v1899, %v2162
      %v2656 = vmul.f32 %v1900, %v2167
      %v2657 = vmul.f32 %v1901, %v2172
      %v2658 = vmul.f32 %v1902, %v2177
      %v2659 = vmul.f32 %v1903, %v2182
      %v2660 = vmul.f32 %v1904, %v2187
      %v2661 = vmul.f32 %v1905, %v2192
      %v2662 = vmul.f32 %v1906, %v2197
      %v2663 = vmul.f32 %v1907, %v2202
      %v2664 = vmul.f32 %v1908, %v2207
      %v2665 = vmul.f32 %v1909, %v2212
      %v2666 = vmul.f32 %v1910, %v2217
      %v2667 = vmul.f32 %v1911, %v2222
      %v2668 = vmul.f32 %v1912, %v2227
      %v2669 = vmul.f32 %v1913, %v2232
      %v2670 = vmul.f32 %v1914, %v2237
      %v2671 = vmul.f32 %v1915, %v2242
      %v2672 = vmul.f32 %v1916, %v2247
      %v2673 = vmul.f32 %v1917, %v2252
      %v2674 = vmul.f32 %v1918, %v2257
      %v2675 = vmul.f32 %v1919, %v2262
      %v2676 = vmul.f32 %v1920, %v2267
      %v2677 = vmul.f32 %v1921, %v2272
      %v2678 = vmul.f32 %v1922, %v2277
      %v2679 = vmul.f32 %v1923, %v2282
      %v2680 = vmul.f32 %v1924, %v2287
      %v2681 = vmul.f32 %v1925, %v2292
      %v2682 = vmul.f32 %v1926, %v2297
      %v2683 = vmul.f32 %v1927, %v2302
      %v2684 = vmul.f32 %v1928, %v2307
      %v2685 = vmul.f32 %v1929, %v2312
      %v2686 = vmul.f32 %v1930, %v2317
      %v2687 = vmul.f32 %v1931, %v2322
      %v2688 = vmul.f32 %v1932, %v2327
      %v2689 = vmul.f32 %v1933, %v2332
      %v2690 = vmul.f32 %v1934, %v2337
      %v2691 = vmul.f32 %v1935, %v2342
      %v2692 = vmul.f32 %v1936, %v2347
      %v2693 = vmul.f32 %v1937, %v2352
      %v2694 = vmul.f32 %v1938, %v2357
      %v2695 = vmul.f32 %v1939, %v2362
      %v2696 = vmul.f32 %v1940, %v2367
      %v2697 = vmul.f32 %v1941, %v2372
      %v2698 = vmul.f32 %v1942, %v2377
      %v2699 = vmul.f32 %v1943, %v2382
      %v2700 = vmul.f32 %v1944, %v2387
      %v2701 = vmul.f32 %v1945, %v2392
      %v2702 = vmul.f32 %v1946, %v2397
      %v2703 = vmul.f32 %v1947, %v2402
      %v2704 = vmul.f32 %v1948, %v2407
      %v2705 = vmul.f32 %v1949, %v2412
      %v2706 = vmul.f32 %v1950, %v2417
      %v2707 = vmul.f32 %v1951, %v2422
      %v2708 = vmul.f32 %v1952, %v2427
      %v2709 = vmul.f32 %v1953, %v2432
      %v2710 = vmul.f32 %v1954, %v2437
      %v2711 = vmul.f32 %v1955, %v2442
      %v2712 = vmul.f32 %v1956, %v2447
      %v2713 = vmul.f32 %v1957, %v2452
      %v2714 = vmul.f32 %v1958, %v2457
      %v2715 = vmul.f32 %v1959, %v2462
      %v2716 = vmul.f32 %v1960, %v2467
      %v2717 = vmul.f32 %v1961, %v2472
      %v2718 = vmul.f32 %v1962, %v2477
      %v2719 = vmul.f32 %v1963, %v2482
      %v2720 = vmul.f32 %v1964, %v2487
      %v2721 = vmul.f32 %v1965, %v2492
      %v2722 = vmul.f32 %v1966, %v2497
      %v2723 = vmul.f32 %v1967, %v2502
      %v2724 = vmul.f32 %v1968, %v2507
      %v2725 = vmul.f32 %v1969, %v2512
      %v2726 = vmul.f32 %v1970, %v2517
      %v2727 = vmul.f32 %v1971, %v2522
      %v2728 = vmul.f32 %v1972, %v2527
      %v2729 = vmul.f32 %v1973, %v2532
      %v2730 = vmul.f32 %v1974, %v2537
      %v2731 = vmul.f32 %v1975, %v2542
      %v2732 = vmul.f32 %v1976, %v2547
      %v2733 = vmul.f32 %v1977, %v2552
      %v2734 = vmul.f32 %v1978, %v2557
      %v2735 = vmul.f32 %v1979, %v2562
      %v2736 = vmul.f32 %v1980, %v2567
      %v2737 = vmul.f32 %v1981, %v2572
      %v2738 = vmul.f32 %v1982, %v2577
      %v2739 = vmul.f32 %v1983, %v2582
      %v2740 = vmul.f32 %v1984, %v2587
      %v2741 = vmul.f32 %v1985, %v2592
      %v2742 = vmul.f32 %v1986, %v2597
      %v2743 = vmul.f32 %v1987, %v2602
      %v2744 = vmul.f32 %v1988, %v2607
      %v2745 = vmul.f32 %v1989, %v2612
      %v2746 = vmul.f32 %v1990, %v2617
      %v2747 = vmul.f32 %v1991, %v2622
      %v2748 = vmul.f32 %v1992, %v2627
      %v2749 = vmul.f32 %v1993, %v2632
      %v2750 = vmul.f32 %v1994, %v2637
      %v2751 = vmul.f32 %v1995, %v2642
      %v2752 = vmax.f32 %v2644, %v2646
      %v2753 = vmax.f32 %v2645, %v2647
      %v2754 = vmax.f32 %v2648, %v2650
      %v2755 = vmax.f32 %v2649, %v2651
      %v2756 = vmax.f32 %v2652, %v2654
      %v2757 = vmax.f32 %v2653, %v2655
      %v2758 = vmax.f32 %v2656, %v2658
      %v2759 = vmax.f32 %v2657, %v2659
      %v2760 = vmax.f32 %v2660, %v2662
      %v2761 = vmax.f32 %v2661, %v2663
      %v2762 = vmax.f32 %v2664, %v2666
      %v2763 = vmax.f32 %v2665, %v2667
      %v2764 = vmax.f32 %v2668, %v2670
      %v2765 = vmax.f32 %v2669, %v2671
      %v2766 = vmax.f32 %v2672, %v2674
      %v2767 = vmax.f32 %v2673, %v2675
      %v2768 = vmax.f32 %v2676, %v2678
      %v2769 = vmax.f32 %v2677, %v2679
      %v2770 = vmax.f32 %v2680, %v2682
      %v2771 = vmax.f32 %v2681, %v2683
      %v2772 = vmax.f32 %v2684, %v2686
      %v2773 = vmax.f32 %v2685, %v2687
      %v2774 = vmax.f32 %v2688, %v2690
      %v2775 = vmax.f32 %v2689, %v2691
      %v2776 = vmax.f32 %v2692, %v2694
      %v2777 = vmax.f32 %v2693, %v2695
      %v2778 = vmax.f32 %v2696, %v2698
      %v2779 = vmax.f32 %v2697, %v2699
      %v2780 = vmax.f32 %v2700, %v2702
      %v2781 = vmax.f32 %v2701, %v2703
      %v2782 = vmax.f32 %v2704, %v2706
      %v2783 = vmax.f32 %v2705, %v2707
      %v2784 = vmax.f32 %v2708, %v2710
      %v2785 = vmax.f32 %v2709, %v2711
      %v2786 = vmax.f32 %v2712, %v2714
      %v2787 = vmax.f32 %v2713, %v2715
      %v2788 = vmax.f32 %v2716, %v2718
      %v2789 = vmax.f32 %v2717, %v2719
      %v2790 = vmax.f32 %v2720, %v2722
      %v2791 = vmax.f32 %v2721, %v2723
      %v2792 = vmax.f32 %v2724, %v2726
      %v2793 = vmax.f32 %v2725, %v2727
      %v2794 = vmax.f32 %v2728, %v2730
      %v2795 = vmax.f32 %v2729, %v2731
      %v2796 = vmax.f32 %v2732, %v2734
      %v2797 = vmax.f32 %v2733, %v2735
      %v2798 = vmax.f32 %v2736, %v2738
      %v2799 = vmax.f32 %v2737, %v2739
      %v2800 = vmax.f32 %v2740, %v2742
      %v2801 = vmax.f32 %v2741, %v2743
      %v2802 = vmax.f32 %v2744, %v2746
      %v2803 = vmax.f32 %v2745, %v2747
      %v2804 = vmax.f32 %v2748, %v2750
      %v2805 = vmax.f32 %v2749, %v2751
      %vm2860 = vcmask 1046528
      %v2861 = vrot.slane %v2644, 1
      %v2862 = vrot.slane %v2645, 1
      %v2863 = vsel %vm2860, %v2861, %v2862
      %v2864 = vrot.slane %v2648, 1
      %v2865 = vrot.slane %v2649, 1
      %v2866 = vsel %vm2860, %v2864, %v2865
      %v2867 = vrot.slane %v2652, 1
      %v2868 = vrot.slane %v2653, 1
      %v2869 = vsel %vm2860, %v2867, %v2868
      %v2870 = vrot.slane %v2656, 1
      %v2871 = vrot.slane %v2657, 1
      %v2872 = vsel %vm2860, %v2870, %v2871
      %v2873 = vrot.slane %v2660, 1
      %v2874 = vrot.slane %v2661, 1
      %v2875 = vsel %vm2860, %v2873, %v2874
      %v2876 = vrot.slane %v2664, 1
      %v2877 = vrot.slane %v2665, 1
      %v2878 = vsel %vm2860, %v2876, %v2877
      %v2879 = vrot.slane %v2668, 1
      %v2880 = vrot.slane %v2669, 1
      %v2881 = vsel %vm2860, %v2879, %v2880
      %v2882 = vrot.slane %v2672, 1
      %v2883 = vrot.slane %v2673, 1
      %v2884 = vsel %vm2860, %v2882, %v2883
      %v2885 = vrot.slane %v2676, 1
      %v2886 = vrot.slane %v2677, 1
      %v2887 = vsel %vm2860, %v2885, %v2886
      %v2888 = vrot.slane %v2680, 1
      %v2889 = vrot.slane %v2681, 1
      %v2890 = vsel %vm2860, %v2888, %v2889
      %v2891 = vrot.slane %v2684, 1
      %v2892 = vrot.slane %v2685, 1
      %v2893 = vsel %vm2860, %v2891, %v2892
      %v2894 = vrot.slane %v2688, 1
      %v2895 = vrot.slane %v2689, 1
      %v2896 = vsel %vm2860, %v2894, %v2895
      %v2897 = vrot.slane %v2692, 1
      %v2898 = vrot.slane %v2693, 1
      %v2899 = vsel %vm2860, %v2897, %v2898
      %v2900 = vrot.slane %v2696, 1
      %v2901 = vrot.slane %v2697, 1
      %v2902 = vsel %vm2860, %v2900, %v2901
      %v2903 = vrot.slane %v2700, 1
      %v2904 = vrot.slane %v2701, 1
      %v2905 = vsel %vm2860, %v2903, %v2904
      %v2906 = vrot.slane %v2704, 1
      %v2907 = vrot.slane %v2705, 1
      %v2908 = vsel %vm2860, %v2906, %v2907
      %v2909 = vrot.slane %v2708, 1
      %v2910 = vrot.slane %v2709, 1
      %v2911 = vsel %vm2860, %v2909, %v2910
      %v2912 = vrot.slane %v2712, 1
      %v2913 = vrot.slane %v2713, 1
      %v2914 = vsel %vm2860, %v2912, %v2913
      %v2915 = vrot.slane %v2716, 1
      %v2916 = vrot.slane %v2717, 1
      %v2917 = vsel %vm2860, %v2915, %v2916
      %v2918 = vrot.slane %v2720, 1
      %v2919 = vrot.slane %v2721, 1
      %v2920 = vsel %vm2860, %v2918, %v2919
      %v2921 = vrot.slane %v2724, 1
      %v2922 = vrot.slane %v2725, 1
      %v2923 = vsel %vm2860, %v2921, %v2922
      %v2924 = vrot.slane %v2728, 1
      %v2925 = vrot.slane %v2729, 1
      %v2926 = vsel %vm2860, %v2924, %v2925
      %v2927 = vrot.slane %v2732, 1
      %v2928 = vrot.slane %v2733, 1
      %v2929 = vsel %vm2860, %v2927, %v2928
      %v2930 = vrot.slane %v2736, 1
      %v2931 = vrot.slane %v2737, 1
      %v2932 = vsel %vm2860, %v2930, %v2931
      %v2933 = vrot.slane %v2740, 1
      %v2934 = vrot.slane %v2741, 1
      %v2935 = vsel %vm2860, %v2933, %v2934
      %v2936 = vrot.slane %v2744, 1
      %v2937 = vrot.slane %v2745, 1
      %v2938 = vsel %vm2860, %v2936, %v2937
      %v2939 = vrot.slane %v2748, 1
      %v2940 = vrot.slane %v2749, 1
      %v2941 = vsel %vm2860, %v2939, %v2940
      %v2996 = vmax.f32 %v2752, %v2863
      %v2997 = vmax.f32 %v2753, %v2862
      %v2998 = vmax.f32 %v2754, %v2866
      %v2999 = vmax.f32 %v2755, %v2865
      %v3000 = vmax.f32 %v2756, %v2869
      %v3001 = vmax.f32 %v2757, %v2868
      %v3002 = vmax.f32 %v2758, %v2872
      %v3003 = vmax.f32 %v2759, %v2871
      %v3004 = vmax.f32 %v2760, %v2875
      %v3005 = vmax.f32 %v2761, %v2874
      %v3006 = vmax.f32 %v2762, %v2878
      %v3007 = vmax.f32 %v2763, %v2877
      %v3008 = vmax.f32 %v2764, %v2881
      %v3009 = vmax.f32 %v2765, %v2880
      %v3010 = vmax.f32 %v2766, %v2884
      %v3011 = vmax.f32 %v2767, %v2883
      %v3012 = vmax.f32 %v2768, %v2887
      %v3013 = vmax.f32 %v2769, %v2886
      %v3014 = vmax.f32 %v2770, %v2890
      %v3015 = vmax.f32 %v2771, %v2889
      %v3016 = vmax.f32 %v2772, %v2893
      %v3017 = vmax.f32 %v2773, %v2892
      %v3018 = vmax.f32 %v2774, %v2896
      %v3019 = vmax.f32 %v2775, %v2895
      %v3020 = vmax.f32 %v2776, %v2899
      %v3021 = vmax.f32 %v2777, %v2898
      %v3022 = vmax.f32 %v2778, %v2902
      %v3023 = vmax.f32 %v2779, %v2901
      %v3024 = vmax.f32 %v2780, %v2905
      %v3025 = vmax.f32 %v2781, %v2904
      %v3026 = vmax.f32 %v2782, %v2908
      %v3027 = vmax.f32 %v2783, %v2907
      %v3028 = vmax.f32 %v2784, %v2911
      %v3029 = vmax.f32 %v2785, %v2910
      %v3030 = vmax.f32 %v2786, %v2914
      %v3031 = vmax.f32 %v2787, %v2913
      %v3032 = vmax.f32 %v2788, %v2917
      %v3033 = vmax.f32 %v2789, %v2916
      %v3034 = vmax.f32 %v2790, %v2920
      %v3035 = vmax.f32 %v2791, %v2919
      %v3036 = vmax.f32 %v2792, %v2923
      %v3037 = vmax.f32 %v2793, %v2922
      %v3038 = vmax.f32 %v2794, %v2926
      %v3039 = vmax.f32 %v2795, %v2925
      %v3040 = vmax.f32 %v2796, %v2929
      %v3041 = vmax.f32 %v2797, %v2928
      %v3042 = vmax.f32 %v2798, %v2932
      %v3043 = vmax.f32 %v2799, %v2931
      %v3044 = vmax.f32 %v2800, %v2935
      %v3045 = vmax.f32 %v2801, %v2934
      %v3046 = vmax.f32 %v2802, %v2938
      %v3047 = vmax.f32 %v2803, %v2937
      %v3048 = vmax.f32 %v2804, %v2941
      %v3049 = vmax.f32 %v2805, %v2940
      %v3050 = vmax.f32 %v2996, %v3024
      %v3051 = vmax.f32 %v2997, %v3025
      %v3052 = vmax.f32 %v2998, %v3026
      %v3053 = vmax.f32 %v2999, %v3027
      %v3054 = vmax.f32 %v3000, %v3028
      %v3055 = vmax.f32 %v3001, %v3029
      %v3056 = vmax.f32 %v3002, %v3030
      %v3057 = vmax.f32 %v3003, %v3031
      %v3058 = vmax.f32 %v3004, %v3032
      %v3059 = vmax.f32 %v3005, %v3033
      %v3060 = vmax.f32 %v3006, %v3034
      %v3061 = vmax.f32 %v3007, %v3035
      %v3062 = vmax.f32 %v3008, %v3036
      %v3063 = vmax.f32 %v3009, %v3037
      %v3064 = vmax.f32 %v3010, %v3038
      %v3065 = vmax.f32 %v3011, %v3039
      %v3066 = vmax.f32 %v3012, %v3040
      %v3067 = vmax.f32 %v3013, %v3041
      %v3068 = vmax.f32 %v3014, %v3042
      %v3069 = vmax.f32 %v3015, %v3043
      %v3070 = vmax.f32 %v3016, %v3044
      %v3071 = vmax.f32 %v3017, %v3045
      %v3072 = vmax.f32 %v3018, %v3046
      %v3073 = vmax.f32 %v3019, %v3047
      %v3074 = vmax.f32 %v3020, %v3048
      %v3075 = vmax.f32 %v3021, %v3049
      %v3076 = vmax.f32 %v3050, %v2998
      %v3077 = vmax.f32 %v3051, %v2999
      %v3078 = vmax.f32 %v3052, %v3000
      %v3079 = vmax.f32 %v3053, %v3001
      %v3080 = vmax.f32 %v3054, %v3002
      %v3081 = vmax.f32 %v3055, %v3003
      %v3082 = vmax.f32 %v3056, %v3004
      %v3083 = vmax.f32 %v3057, %v3005
      %v3084 = vmax.f32 %v3058, %v3006
      %v3085 = vmax.f32 %v3059, %v3007
      %v3086 = vmax.f32 %v3060, %v3008
      %v3087 = vmax.f32 %v3061, %v3009
      %v3088 = vmax.f32 %v3062, %v3010
      %v3089 = vmax.f32 %v3063, %v3011
      %v3090 = vmax.f32 %v3064, %v3012
      %v3091 = vmax.f32 %v3065, %v3013
      %v3092 = vmax.f32 %v3066, %v3014
      %v3093 = vmax.f32 %v3067, %v3015
      %v3094 = vmax.f32 %v3068, %v3016
      %v3095 = vmax.f32 %v3069, %v3017
      %v3096 = vmax.f32 %v3070, %v3018
      %v3097 = vmax.f32 %v3071, %v3019
      %v3098 = vmax.f32 %v3072, %v3020
      %v3099 = vmax.f32 %v3073, %v3021
      %v3100 = vmax.f32 %v3074, %v3022
      %v3101 = vmax.f32 %v3075, %v3023
      %3102 = vst [vmem:[%s224] sm:$0xff] %v3076
      %3103 = vst [vmem:[%s224 + $0x8] sm:$0x1f] %v3077
      %3104 = vst [vmem:[%s224 + $0x10] sm:$0xff] %v3078
      %3105 = vst [vmem:[%s224 + $0x18] sm:$0x1f] %v3079
      %3106 = vst [vmem:[%s224 + $0x20] sm:$0xff] %v3080
      %3107 = vst [vmem:[%s224 + $0x28] sm:$0x1f] %v3081
      %3108 = vst [vmem:[%s224 + $0x30] sm:$0xff] %v3082
      %3109 = vst [vmem:[%s224 + $0x38] sm:$0x1f] %v3083
      %3110 = vst [vmem:[%s224 + $0x40] sm:$0xff] %v3084
      %3111 = vst [vmem:[%s224 + $0x48] sm:$0x1f] %v3085
      %3112 = vst [vmem:[%s224 + $0x50] sm:$0xff] %v3086
      %3113 = vst [vmem:[%s224 + $0x58] sm:$0x1f] %v3087
      %3114 = vst [vmem:[%s224 + $0x60] sm:$0xff] %v3088
      %3115 = vst [vmem:[%s224 + $0x68] sm:$0x1f] %v3089
      %3116 = vst [vmem:[%s224 + $0x70] sm:$0xff] %v3090
      %3117 = vst [vmem:[%s224 + $0x78] sm:$0x1f] %v3091
      %3118 = vst [vmem:[%s224 + $0x80] sm:$0xff] %v3092
      %3119 = vst [vmem:[%s224 + $0x88] sm:$0x1f] %v3093
      %3120 = vst [vmem:[%s224 + $0x90] sm:$0xff] %v3094
      %3121 = vst [vmem:[%s224 + $0x98] sm:$0x1f] %v3095
      %3122 = vst [vmem:[%s224 + $0xa0] sm:$0xff] %v3096
      %3123 = vst [vmem:[%s224 + $0xa8] sm:$0x1f] %v3097
      %3124 = vst [vmem:[%s224 + $0xb0] sm:$0xff] %v3098
      %3125 = vst [vmem:[%s224 + $0xb8] sm:$0x1f] %v3099
      %3126 = vst [vmem:[%s224 + $0xc0] sm:$0xff] %v3100
      %3127 = vst [vmem:[%s224 + $0xc8] sm:$0x1f] %v3101
      %p3128 = scmp.lt.s32.totalorder %s16, 1
      %s3129 = scalar_select %p3128, %s16, 1
      %s3130 = smul.addr %s3129, 26
      %s3131 = smul.addr %s3130, 8
      %s3132 = scalar_lea.vmem %s5, %s3131
      // Predicated region
      $region41: #{sqnxt_init_block.1} parent=39 // pred_check
        %p3133 = pneg %p144
      $region42: #{sqnxt_init_block.1} parent=39 // pred_check_branch
        %3135 = sbr.rel (%p3133) target = $region44
      $region43: #{sqnxt_init_block.1} parent=39 // pred_region
        _
      $region44: #{sqnxt_init_block.1} parent=39 // pred_fallthru
        _
    $region40: #{sqnxt_init_block.1} parent=5 // pred_fallthru
      _
    %p3136 = scmp.le.s32.totalorder 2, %s11
    // Predicated region
    $region45: #{sqnxt_init_block.1} parent=5 // pred_check
      %p3137 = pneg %p3136
    $region46: #{sqnxt_init_block.1} parent=5 // pred_check_branch
      %3139 = sbr.rel (%p3137) target = $region48
    $region47: #{sqnxt_init_block.1} parent=5 // pred_region
      %s3140 = ssub.s32 %s11, 2
      // Predicated region
      $region49: #{sqnxt_init_block.1} parent=47 // pred_check
        %p3141 = pneg %p150
      $region50: #{sqnxt_init_block.1} parent=47 // pred_check_branch
        %3143 = sbr.rel (%p3141) target = $region52
      $region51: #{sqnxt_init_block.1} parent=47 // pred_region
        %p3144 = scmp.lt.s32.totalorder %s17, 1
        %s3145 = scalar_select %p3144, %s17, 1
        %s3146 = smul.addr %s3145, 26
        %s3147 = smul.addr %s3146, 8
        %s3148 = scalar_lea.vmem %s5, %s3147
      $region52: #{sqnxt_init_block.1} parent=47 // pred_fallthru
        _
    $region48: #{sqnxt_init_block.1} parent=5 // pred_fallthru
      _
  $region6: #{sqnxt_init_block.1} parent=0 // loop_footer
    %s15 = sadd.s32 1, %s11
  $region7: #{sqnxt_init_block.1} parent=0 // loop_footer_branch
    %10 = sbr.rel target = $region3
  $region8: #{sqnxt_init_block.1} parent=0 // loop_exit
    _

</llo_original>
